<compile_context>
chip_gen: v7x
topology: tpu7x:2x2x1
jax: 0.10.0
libtpu: 0.0.40
codegen_flags: <defaults>
</compile_context>

<pallas_src>
import jax
import jax.numpy as jnp
import numpy as np
from jax.experimental import pallas as pl
from jax.experimental.pallas import tpu as pltpu


def _fcn_head_kernel(x_main_ref, x_halo_ref, w1_ref, scale_ref, shift_ref,
                     wseg_ref, bseg_ref, o_ref, xs2_ref, acc_ref):
    # x_main_ref : (1, TH, W+2, Cc)    bf16  main rows of the padded strip
    # x_halo_ref : (1, 2,  W+2, Cc)    bf16  2 halo rows below the strip
    # w1_ref     : (3, 1, 3*Cc, Cmid)  bf16  pre-packed 3x3 weights (dx-major)
    # scale_ref  : (1, Cmid)           f32   folded BN scale
    # shift_ref  : (1, Cmid)           f32   folded BN shift (incl. conv bias)
    # wseg_ref   : (Cmid, NCLSP)       bf16  1x1 conv_seg weights (zero-padded)
    # bseg_ref   : (1, NCLSP)          f32   conv_seg bias (zero-padded)
    # o_ref      : (1, TH*W, NCLSP)    f32   lane-dense output block
    # xs2_ref    : (TH+2, W, 3*Cc)     bf16  dx-concatenated im2col strip
    # acc_ref    : (TH*W, Cmid)        f32   accumulator over Cin chunks
    k = pl.program_id(2)
    nk = pl.num_programs(2)

    TH = x_main_ref.shape[1]
    W = x_main_ref.shape[2] - 2
    Cc = x_main_ref.shape[3]

    @pl.when(k == 0)
    def _init():
        acc_ref[...] = jnp.zeros_like(acc_ref)

    # Build the dx-concatenated im2col strip ONCE per (strip, chunk):
    #   xs2[r, x, dx*Cc:(dx+1)*Cc] == padded_input[row0 + r, x + dx, chunk]
    main = x_main_ref[0]                                    # (TH, W+2, Cc)
    xs2_ref[0:TH, :, :] = jnp.concatenate(
        [main[:, 0:W, :], main[:, 1:W + 1, :], main[:, 2:W + 2, :]], axis=-1)
    halo = x_halo_ref[0]                                    # (2,  W+2, Cc)
    xs2_ref[TH:TH + 2, :, :] = jnp.concatenate(
        [halo[:, 0:W, :], halo[:, 1:W + 1, :], halo[:, 2:W + 2, :]], axis=-1)

    # 3x3 conv = 3 MXU calls (K = 3*Cc); each LHS is a contiguous slice of
    # xs2 at leading-dim offset dy, each RHS is consumed in-place (no reshape).
    for dy in range(3):
        lhs = xs2_ref[dy:dy + TH, :, :].reshape(TH * W, 3 * Cc)
        acc_ref[...] += jnp.dot(lhs, w1_ref[dy, 0],
                                preferred_element_type=jnp.float32)

    @pl.when(k == nk - 1)
    def _finalize():
        # Folded BatchNorm (eval) + ReLU in f32, then 1x1 conv_seg on the MXU.
        h = jnp.maximum(acc_ref[...] * scale_ref[...] + shift_ref[...], 0.0)
        out = jnp.dot(h.astype(wseg_ref.dtype), wseg_ref[...],
                      preferred_element_type=jnp.float32) + bseg_ref[...]
        o_ref[0] = out.astype(o_ref.dtype)


def _tpu_vmem_and_cores():
    """Best-effort per-TensorCore VMEM / core-count query; conservative fallback."""
    vmem_cap = 0
    try:
        info = pltpu.get_tpu_info()
        vmem_cap = int(info.vmem_capacity_bytes)
    except Exception:
        vmem_cap = 0
    if vmem_cap <= 0:
        vmem_cap = 64 * 1024 * 1024          # conservative: v7x per-TC VMEM
    # v7x-class parts expose ~64 MiB/TC and have 2 TensorCores per chip;
    # v5e/v6e expose 128 MiB and have a single TensorCore.
    num_cores = 2 if vmem_cap <= 80 * 1024 * 1024 else 1
    return vmem_cap, num_cores


def _working_set_bytes(TH, W, Cc, Cmid, NCLSP):
    """Rough per-grid-step VMEM footprint (double-buffered streaming blocks)."""
    xmain = 2 * TH * (W + 2) * Cc * 2
    xhalo = 2 * 2 * (W + 2) * Cc * 2
    w1 = 2 * 9 * Cc * Cmid * 2
    wseg = 2 * Cmid * NCLSP * 2
    out = 2 * TH * W * NCLSP * 4
    xs2 = (TH + 2) * W * 3 * Cc * 2
    acc = TH * W * Cmid * 4
    tmp = TH * W * 3 * Cc * 2                # im2col staging temporary
    small = 4 * (2 * Cmid + NCLSP) * 4
    return xmain + xhalo + w1 + wseg + out + xs2 + acc + tmp + small


_STEP_OVERHEAD_BYTES = 512 * 1024            # ~0.35 us of HBM time per grid step


def _pick_tiles(N, H, W, Cin, Cmid, NCLSP, vmem_cap, num_cores):
    """Generation-aware (TH, Cc): prefer nK=1 (weights fetched once) and the
    fewest strips that fit the VMEM budget; require >= num_cores parallel
    grid steps so dual-TensorCore parts keep both cores busy."""
    budget = int(vmem_cap * 0.75)

    cc_candidates = [Cin]
    if Cin % 128 == 0:
        for c in (1024, 512, 256, 128):
            if c < Cin and Cin % c == 0:
                cc_candidates.append(c)

    th_candidates = [th for th in range(H, 1, -1)
                     if H % th == 0 and th % 2 == 0 and (th * W) % 8 == 0]
    if not th_candidates:
        th_candidates = [H]                  # H is asserted even upstream

    best = None
    for want_cores in (num_cores, 1):
        for Cc in cc_candidates:
            nK = Cin // Cc
            for TH in th_candidates:
                nH = H // TH
                if N * nH < want_cores:
                    continue
                if _working_set_bytes(TH, W, Cc, Cmid, NCLSP) > budget:
                    continue
                # weight HBM traffic: fetched once if nK==1 (constant block
                # index), else re-fetched for every strip.
                w1_traffic = 9 * Cin * Cmid * 2 * (1 if nK == 1 else N * nH)
                score = w1_traffic + N * nH * nK * _STEP_OVERHEAD_BYTES
                if best is None or score < best[0]:
                    best = (score, TH, Cc)
        if best is not None:
            break
    if best is None:
        best = (0, th_candidates[-1], min(cc_candidates))
    return best[1], best[2]


@jax.jit
def fcn_head_forward(x_nchw, w1_hwio, b1, gamma, beta, run_mean, run_var,
                     wseg, bseg, eps=1e-5):
    """FCNHead forward (eval mode). (N, Cin, H, W) f32 -> (N, NCLS, H, W) f32."""
    N, Cin, H, W = x_nchw.shape
    Cmid = w1_hwio.shape[-1]
    NCLS = wseg.shape[-1]
    assert H % 2 == 0, "halo blocking assumes an even number of rows"

    NCLSP = ((NCLS + 127) // 128) * 128      # lane-dense output width
    vmem_cap, num_cores = _tpu_vmem_and_cores()
    TH, Cc = _pick_tiles(N, H, W, Cin, Cmid, NCLSP, vmem_cap, num_cores)
    assert TH % 2 == 0, "halo block index map requires an even row tile"
    assert H % TH == 0 and Cin % Cc == 0
    nH = H // TH
    nK = Cin // Cc

    # ---- glue: layout + pad + BN folding + weight packing (plain JAX) ----
    x_nhwc = jnp.transpose(x_nchw, (0, 2, 3, 1)).astype(jnp.bfloat16)
    x_pad = jnp.pad(x_nhwc, ((0, 0), (1, 1), (1, 1), (0, 0)))  # N,H+2,W+2,Cin

    inv_std = 1.0 / jnp.sqrt(run_var.astype(jnp.float32) + eps)
    scale = (gamma * inv_std).astype(jnp.float32)                 # (Cmid,)
    shift = ((b1 - run_mean) * scale + beta).astype(jnp.float32)  # (Cmid,)
    scale2d = scale.reshape(1, Cmid)
    shift2d = shift.reshape(1, Cmid)

    # Pre-pack 3x3 weights as (dy, chunk, dx-major 3*Cc, Cmid): the kernel RHS
    # is w1_ref[dy, 0] with no in-kernel reshape/relayout.
    w1_packed = (w1_hwio.astype(jnp.bfloat16)
                 .reshape(3, 3, nK, Cc, Cmid)
                 .transpose(0, 2, 1, 3, 4)
                 .reshape(3, nK, 3 * Cc, Cmid))
    wseg_p = jnp.zeros((Cmid, NCLSP), jnp.bfloat16).at[:, :NCLS].set(
        wseg.astype(jnp.bfloat16))
    bseg_p = jnp.zeros((1, NCLSP), jnp.float32).at[0, :NCLS].set(
        bseg.astype(jnp.float32))

    flops = 2 * N * H * W * (9 * Cin * Cmid + Cmid * NCLSP)
    w1_hbm = 9 * Cin * Cmid * 2 * (1 if nK == 1 else N * nH)
    bytes_accessed = (N * (H + 2) * (W + 2) * Cin * 2 + w1_hbm
                      + Cmid * NCLSP * 2 + (2 * Cmid + NCLSP) * 4
                      + N * H * W * NCLSP * 4)

    # ~96 MiB on 128 MiB v5e/v6e, ~48 MiB on 64 MiB v7x (leave headroom).
    vmem_limit = max(min(int(vmem_cap * 0.75), vmem_cap - (16 << 20)), 32 << 20)

    out_flat = pl.pallas_call(
        _fcn_head_kernel,
        out_shape=jax.ShapeDtypeStruct((N, H * W, NCLSP), jnp.float32),
        grid_spec=pltpu.PrefetchScalarGridSpec(
            num_scalar_prefetch=0,
            grid=(N, nH, nK),
            in_specs=[
                # main TH rows of the padded strip
                pl.BlockSpec((1, TH, W + 2, Cc), lambda n, i, k: (n, i, 0, k)),
                # 2-row halo just below the strip (rows (i+1)*TH .. (i+1)*TH+1)
                pl.BlockSpec((1, 2, W + 2, Cc),
                             lambda n, i, k: (n, (i + 1) * (TH // 2), 0, k)),
                pl.BlockSpec((3, 1, 3 * Cc, Cmid), lambda n, i, k: (0, k, 0, 0)),
                pl.BlockSpec((1, Cmid), lambda n, i, k: (0, 0)),
                pl.BlockSpec((1, Cmid), lambda n, i, k: (0, 0)),
                pl.BlockSpec((Cmid, NCLSP), lambda n, i, k: (0, 0)),
                pl.BlockSpec((1, NCLSP), lambda n, i, k: (0, 0)),
            ],
            out_specs=pl.BlockSpec((1, TH * W, NCLSP),
                                   lambda n, i, k: (n, i, 0)),
            scratch_shapes=[
                pltpu.VMEM((TH + 2, W, 3 * Cc), jnp.bfloat16),
                pltpu.VMEM((TH * W, Cmid), jnp.float32),
            ],
        ),
        compiler_params=pltpu.CompilerParams(
            dimension_semantics=("parallel", "parallel", "arbitrary"),
            vmem_limit_bytes=vmem_limit),
        cost_estimate=pl.CostEstimate(flops=flops, transcendentals=0,
                                      bytes_accessed=bytes_accessed),
    )(x_pad, x_pad, w1_packed, scale2d, shift2d, wseg_p, bseg_p)

    out_nhwc = out_flat[:, :, :NCLS].reshape(N, H, W, NCLS)
    return jnp.transpose(out_nhwc, (0, 3, 1, 2)).astype(jnp.float32)


def _reference_forward(x_nchw, w1_hwio, b1, gamma, beta, run_mean, run_var,
                       wseg, bseg, eps=1e-5, matmul_dtype=jnp.float32):
    """Pure-JAX reference. matmul_dtype=bfloat16 mirrors the kernel's MXU dtype."""
    x = jnp.transpose(x_nchw, (0, 2, 3, 1))
    y = jax.lax.conv_general_dilated(
        x.astype(matmul_dtype), w1_hwio.astype(matmul_dtype),
        window_strides=(1, 1), padding="SAME",
        dimension_numbers=("NHWC", "HWIO", "NHWC"),
        preferred_element_type=jnp.float32) + b1
    y = (y - run_mean) / jnp.sqrt(run_var + eps) * gamma + beta
    y = jnp.maximum(y, 0.0)
    y = jnp.einsum("nhwc,ck->nhwk", y.astype(matmul_dtype),
                   wseg.astype(matmul_dtype),
                   preferred_element_type=jnp.float32) + bseg
    return jnp.transpose(y, (0, 3, 1, 2))


if __name__ == "__main__":
    # Small shapes consistent with FCNHead(num_convs=1, kernel_size=3)
    N, Cin, H, W = 2, 16, 16, 16
    Cmid, NCLS = 32, 8

    key = jax.random.PRNGKey(0)
    ks = jax.random.split(key, 8)
    x = jax.random.normal(ks[0], (N, Cin, H, W), dtype=jnp.float32)

    # ConvModule: Conv2d(Cin, Cmid, 3, padding=1) + BatchNorm2d(Cmid) + ReLU
    w1 = jax.random.normal(ks[1], (3, 3, Cin, Cmid), dtype=jnp.float32) * 0.05
    b1 = jax.random.normal(ks[2], (Cmid,), dtype=jnp.float32) * 0.05
    gamma = 1.0 + 0.1 * jax.random.normal(ks[3], (Cmid,), dtype=jnp.float32)
    beta = 0.1 * jax.random.normal(ks[4], (Cmid,), dtype=jnp.float32)
    run_mean = 0.1 * jax.random.normal(ks[5], (Cmid,), dtype=jnp.float32)
    run_var = jnp.abs(1.0 + 0.1 * jax.random.normal(ks[6], (Cmid,),
                                                    dtype=jnp.float32))
    # conv_seg: Conv2d(Cmid, NCLS, 1)
    wseg = jax.random.normal(ks[7], (Cmid, NCLS), dtype=jnp.float32) * 0.05
    bseg = jnp.linspace(-0.1, 0.1, NCLS, dtype=jnp.float32)

    out = fcn_head_forward(x, w1, b1, gamma, beta, run_mean, run_var,
                           wseg, bseg)
    out = jax.block_until_ready(out)
    assert out.shape == (N, NCLS, H, W)

    # Primary check: bf16-matmul reference (matches the kernel's MXU dtype).
    ref_bf16 = _reference_forward(x, w1, b1, gamma, beta, run_mean, run_var,
                                  wseg, bseg, matmul_dtype=jnp.bfloat16)
    np.testing.assert_allclose(np.asarray(out), np.asarray(ref_bf16),
                               rtol=5e-3, atol=5e-3)

    # Sanity check vs. full-f32 reference (looser tol due to bf16 inputs).
    ref_f32 = _reference_forward(x, w1, b1, gamma, beta, run_mean, run_var,
                                 wseg, bseg, matmul_dtype=jnp.float32)
    np.testing.assert_allclose(np.asarray(out), np.asarray(ref_f32),
                               rtol=5e-2, atol=5e-2)

    print("KERNEL_OK")
</pallas_src>

<mosaic_0001>
module attributes {stable_mosaic.version = 11 : i64} {
  func.func @_fcn_head_kernel(%arg0: i32, %arg1: i32, %arg2: i32, %arg3: memref<1x16x18x16xbf16, #tpu.memory_space<vmem>>, %arg4: memref<1x2x18x16xbf16, #tpu.memory_space<vmem>>, %arg5: memref<3x1x48x32xbf16, #tpu.memory_space<vmem>>, %arg6: memref<1x32xf32, #tpu.memory_space<vmem>>, %arg7: memref<1x32xf32, #tpu.memory_space<vmem>>, %arg8: memref<32x128xbf16, #tpu.memory_space<vmem>>, %arg9: memref<1x128xf32, #tpu.memory_space<vmem>>, %arg10: memref<1x256x128xf32, #tpu.memory_space<vmem>>, %arg11: memref<18x16x48xbf16, #tpu.memory_space<vmem>>, %arg12: memref<256x32xf32, #tpu.memory_space<vmem>>) attributes {dimension_semantics = [#tpu.dimension_semantics<parallel>, #tpu.dimension_semantics<parallel>, #tpu.dimension_semantics<arbitrary>], iteration_bounds = array<i64: 2, 1, 1>, scalar_prefetch = 0 : i64, scratch_operands = 2 : i64, tpu.core_type = #tpu.core_type<tc>, window_params = [{transform_indices = @transform_0, window_bounds = array<i64: 1, 16, 18, 16>}, {transform_indices = @transform_1, window_bounds = array<i64: 1, 2, 18, 16>}, {transform_indices = @transform_2, window_bounds = array<i64: 3, 1, 48, 32>}, {pipeline_mode = #tpu.pipeline_mode<synchronous>, transform_indices = @transform_3, window_bounds = array<i64: 1, 32>}, {pipeline_mode = #tpu.pipeline_mode<synchronous>, transform_indices = @transform_4, window_bounds = array<i64: 1, 32>}, {pipeline_mode = #tpu.pipeline_mode<synchronous>, transform_indices = @transform_5, window_bounds = array<i64: 32, 128>}, {pipeline_mode = #tpu.pipeline_mode<synchronous>, transform_indices = @transform_6, window_bounds = array<i64: 1, 128>}, {transform_indices = @transform_7, window_bounds = array<i64: 1, 256, 128>}]} {
    %c0_i32 = arith.constant 0 : i32
    %0 = arith.cmpi eq, %arg2, %c0_i32 : i32
    %1 = arith.extui %0 : i1 to i32
    %c0_i32_0 = arith.constant 0 : i32
    %2 = arith.cmpi ne, %1, %c0_i32_0 : i32
    scf.if %2 {
      %cst_48 = arith.constant 0.000000e+00 : f32
      %44 = vector.broadcast %cst_48 : f32 to vector<256x32xf32>
      %c0_49 = arith.constant 0 : index
      %c0_50 = arith.constant 0 : index
      %45 = vector.load %arg12[%c0_49, %c0_50] : memref<256x32xf32, #tpu.memory_space<vmem>>, vector<256x32xf32>
      tpu.vector_store %arg12[%c0_49, %c0_50], %44 {strides = array<i32>} : memref<256x32xf32, #tpu.memory_space<vmem>>, vector<256x32xf32>,
    } else {
    }
    %c0 = arith.constant 0 : index
    %c0_1 = arith.constant 0 : index
    %c0_2 = arith.constant 0 : index
    %c0_3 = arith.constant 0 : index
    %3 = vector.load %arg3[%c0, %c0_1, %c0_2, %c0_3] : memref<1x16x18x16xbf16, #tpu.memory_space<vmem>>, vector<1x16x18x16xbf16>
    %4 = vector.shape_cast %3 : vector<1x16x18x16xbf16> to vector<16x18x16xbf16>
    %5 = vector.extract_strided_slice %4 {offsets = [0, 0, 0], sizes = [16, 16, 16], strides = [1, 1, 1]} : vector<16x18x16xbf16> to vector<16x16x16xbf16>
    %6 = vector.extract_strided_slice %4 {offsets = [0, 1, 0], sizes = [16, 16, 16], strides = [1, 1, 1]} : vector<16x18x16xbf16> to vector<16x16x16xbf16>
    %7 = vector.extract_strided_slice %4 {offsets = [0, 2, 0], sizes = [16, 16, 16], strides = [1, 1, 1]} : vector<16x18x16xbf16> to vector<16x16x16xbf16>
    %8 = tpu.concatenate %5, %6, %7 in 2 : vector<16x16x16xbf16>, vector<16x16x16xbf16>, vector<16x16x16xbf16> -> vector<16x16x48xbf16>
    %c0_4 = arith.constant 0 : index
    %c0_5 = arith.constant 0 : index
    %c0_6 = arith.constant 0 : index
    %9 = vector.load %arg11[%c0_4, %c0_5, %c0_6] : memref<18x16x48xbf16, #tpu.memory_space<vmem>>, vector<16x16x48xbf16>
    tpu.vector_store %arg11[%c0_4, %c0_5, %c0_6], %8 {strides = array<i32>} : memref<18x16x48xbf16, #tpu.memory_space<vmem>>, vector<16x16x48xbf16>,
    %c0_7 = arith.constant 0 : index
    %c0_8 = arith.constant 0 : index
    %c0_9 = arith.constant 0 : index
    %c0_10 = arith.constant 0 : index
    %10 = vector.load %arg4[%c0_7, %c0_8, %c0_9, %c0_10] : memref<1x2x18x16xbf16, #tpu.memory_space<vmem>>, vector<1x2x18x16xbf16>
    %11 = vector.shape_cast %10 : vector<1x2x18x16xbf16> to vector<2x18x16xbf16>
    %12 = vector.extract_strided_slice %11 {offsets = [0, 0, 0], sizes = [2, 16, 16], strides = [1, 1, 1]} : vector<2x18x16xbf16> to vector<2x16x16xbf16>
    %13 = vector.extract_strided_slice %11 {offsets = [0, 1, 0], sizes = [2, 16, 16], strides = [1, 1, 1]} : vector<2x18x16xbf16> to vector<2x16x16xbf16>
    %14 = vector.extract_strided_slice %11 {offsets = [0, 2, 0], sizes = [2, 16, 16], strides = [1, 1, 1]} : vector<2x18x16xbf16> to vector<2x16x16xbf16>
    %15 = tpu.concatenate %12, %13, %14 in 2 : vector<2x16x16xbf16>, vector<2x16x16xbf16>, vector<2x16x16xbf16> -> vector<2x16x48xbf16>
    %c16 = arith.constant 16 : index
    %c0_11 = arith.constant 0 : index
    %c0_12 = arith.constant 0 : index
    %16 = vector.load %arg11[%c16, %c0_11, %c0_12] : memref<18x16x48xbf16, #tpu.memory_space<vmem>>, vector<2x16x48xbf16>
    tpu.vector_store %arg11[%c16, %c0_11, %c0_12], %15 {strides = array<i32>} : memref<18x16x48xbf16, #tpu.memory_space<vmem>>, vector<2x16x48xbf16>,
    %c0_13 = arith.constant 0 : index
    %c0_14 = arith.constant 0 : index
    %c0_15 = arith.constant 0 : index
    %17 = vector.load %arg11[%c0_13, %c0_14, %c0_15] : memref<18x16x48xbf16, #tpu.memory_space<vmem>>, vector<16x16x48xbf16>
    %18 = vector.shape_cast %17 : vector<16x16x48xbf16> to vector<256x48xbf16>
    %c0_16 = arith.constant 0 : index
    %c0_17 = arith.constant 0 : index
    %19 = vector.load %arg12[%c0_16, %c0_17] : memref<256x32xf32, #tpu.memory_space<vmem>>, vector<256x32xf32>
    %c0_18 = arith.constant 0 : index
    %c0_19 = arith.constant 0 : index
    %c0_20 = arith.constant 0 : index
    %c0_21 = arith.constant 0 : index
    %20 = vector.load %arg5[%c0_18, %c0_19, %c0_20, %c0_21] : memref<3x1x48x32xbf16, #tpu.memory_space<vmem>>, vector<1x1x48x32xbf16>
    %21 = vector.shape_cast %20 : vector<1x1x48x32xbf16> to vector<48x32xbf16>
    %cst = arith.constant dense<0.000000e+00> : vector<256x32xf32>
    %22 = tpu.matmul %18, %21, %cst {dimension_numbers = #tpu.dot_dimension_numbers<[1], [0], [0], [1], [0, 0, 1, 1], [], []>} : vector<256x48xbf16>, vector<48x32xbf16>, vector<256x32xf32> -> vector<256x32xf32>
    %23 = arith.addf %19, %22 : vector<256x32xf32>
    %c0_22 = arith.constant 0 : index
    %c0_23 = arith.constant 0 : index
    %24 = vector.load %arg12[%c0_22, %c0_23] : memref<256x32xf32, #tpu.memory_space<vmem>>, vector<256x32xf32>
    tpu.vector_store %arg12[%c0_22, %c0_23], %23 {strides = array<i32>} : memref<256x32xf32, #tpu.memory_space<vmem>>, vector<256x32xf32>,
    %c1 = arith.constant 1 : index
    %c0_24 = arith.constant 0 : index
    %c0_25 = arith.constant 0 : index
    %25 = vector.load %arg11[%c1, %c0_24, %c0_25] : memref<18x16x48xbf16, #tpu.memory_space<vmem>>, vector<16x16x48xbf16>
    %26 = vector.shape_cast %25 : vector<16x16x48xbf16> to vector<256x48xbf16>
    %c0_26 = arith.constant 0 : index
    %c0_27 = arith.constant 0 : index
    %27 = vector.load %arg12[%c0_26, %c0_27] : memref<256x32xf32, #tpu.memory_space<vmem>>, vector<256x32xf32>
    %c1_28 = arith.constant 1 : index
    %c0_29 = arith.constant 0 : index
    %c0_30 = arith.constant 0 : index
    %c0_31 = arith.constant 0 : index
    %28 = vector.load %arg5[%c1_28, %c0_29, %c0_30, %c0_31] : memref<3x1x48x32xbf16, #tpu.memory_space<vmem>>, vector<1x1x48x32xbf16>
    %29 = vector.shape_cast %28 : vector<1x1x48x32xbf16> to vector<48x32xbf16>
    %cst_32 = arith.constant dense<0.000000e+00> : vector<256x32xf32>
    %30 = tpu.matmul %26, %29, %cst_32 {dimension_numbers = #tpu.dot_dimension_numbers<[1], [0], [0], [1], [0, 0, 1, 1], [], []>} : vector<256x48xbf16>, vector<48x32xbf16>, vector<256x32xf32> -> vector<256x32xf32>
    %31 = arith.addf %27, %30 : vector<256x32xf32>
    %c0_33 = arith.constant 0 : index
    %c0_34 = arith.constant 0 : index
    %32 = vector.load %arg12[%c0_33, %c0_34] : memref<256x32xf32, #tpu.memory_space<vmem>>, vector<256x32xf32>
    tpu.vector_store %arg12[%c0_33, %c0_34], %31 {strides = array<i32>} : memref<256x32xf32, #tpu.memory_space<vmem>>, vector<256x32xf32>,
    %c2 = arith.constant 2 : index
    %c0_35 = arith.constant 0 : index
    %c0_36 = arith.constant 0 : index
    %33 = vector.load %arg11[%c2, %c0_35, %c0_36] : memref<18x16x48xbf16, #tpu.memory_space<vmem>>, vector<16x16x48xbf16>
    %34 = vector.shape_cast %33 : vector<16x16x48xbf16> to vector<256x48xbf16>
    %c0_37 = arith.constant 0 : index
    %c0_38 = arith.constant 0 : index
    %35 = vector.load %arg12[%c0_37, %c0_38] : memref<256x32xf32, #tpu.memory_space<vmem>>, vector<256x32xf32>
    %c2_39 = arith.constant 2 : index
    %c0_40 = arith.constant 0 : index
    %c0_41 = arith.constant 0 : index
    %c0_42 = arith.constant 0 : index
    %36 = vector.load %arg5[%c2_39, %c0_40, %c0_41, %c0_42] : memref<3x1x48x32xbf16, #tpu.memory_space<vmem>>, vector<1x1x48x32xbf16>
    %37 = vector.shape_cast %36 : vector<1x1x48x32xbf16> to vector<48x32xbf16>
    %cst_43 = arith.constant dense<0.000000e+00> : vector<256x32xf32>
    %38 = tpu.matmul %34, %37, %cst_43 {dimension_numbers = #tpu.dot_dimension_numbers<[1], [0], [0], [1], [0, 0, 1, 1], [], []>} : vector<256x48xbf16>, vector<48x32xbf16>, vector<256x32xf32> -> vector<256x32xf32>
    %39 = arith.addf %35, %38 : vector<256x32xf32>
    %c0_44 = arith.constant 0 : index
    %c0_45 = arith.constant 0 : index
    %40 = vector.load %arg12[%c0_44, %c0_45] : memref<256x32xf32, #tpu.memory_space<vmem>>, vector<256x32xf32>
    tpu.vector_store %arg12[%c0_44, %c0_45], %39 {strides = array<i32>} : memref<256x32xf32, #tpu.memory_space<vmem>>, vector<256x32xf32>,
    %c0_i32_46 = arith.constant 0 : i32
    %41 = arith.cmpi eq, %arg2, %c0_i32_46 : i32
    %42 = arith.extui %41 : i1 to i32
    %c0_i32_47 = arith.constant 0 : i32
    %43 = arith.cmpi ne, %42, %c0_i32_47 : i32
    scf.if %43 {
      %c0_48 = arith.constant 0 : index
      %c0_49 = arith.constant 0 : index
      %44 = vector.load %arg12[%c0_48, %c0_49] : memref<256x32xf32, #tpu.memory_space<vmem>>, vector<256x32xf32>
      %c0_50 = arith.constant 0 : index
      %c0_51 = arith.constant 0 : index
      %45 = vector.load %arg6[%c0_50, %c0_51] : memref<1x32xf32, #tpu.memory_space<vmem>>, vector<1x32xf32>
      %46 = vector.broadcast %45 : vector<1x32xf32> to vector<256x32xf32>
      %47 = arith.mulf %44, %46 : vector<256x32xf32>
      %c0_52 = arith.constant 0 : index
      %c0_53 = arith.constant 0 : index
      %48 = vector.load %arg7[%c0_52, %c0_53] : memref<1x32xf32, #tpu.memory_space<vmem>>, vector<1x32xf32>
      %49 = vector.broadcast %48 : vector<1x32xf32> to vector<256x32xf32>
      %50 = arith.addf %47, %49 : vector<256x32xf32>
      %cst_54 = arith.constant 0.000000e+00 : f32
      %51 = vector.broadcast %cst_54 : f32 to vector<256x32xf32>
      %52 = arith.maximumf %50, %51 : vector<256x32xf32>
      %53 = arith.truncf %52 : vector<256x32xf32> to vector<256x32xbf16>
      %c0_55 = arith.constant 0 : index
      %c0_56 = arith.constant 0 : index
      %54 = vector.load %arg8[%c0_55, %c0_56] : memref<32x128xbf16, #tpu.memory_space<vmem>>, vector<32x128xbf16>
      %cst_57 = arith.constant dense<0.000000e+00> : vector<256x128xf32>
      %55 = tpu.matmul %53, %54, %cst_57 {dimension_numbers = #tpu.dot_dimension_numbers<[1], [0], [0], [1], [0, 0, 1, 1], [], []>} : vector<256x32xbf16>, vector<32x128xbf16>, vector<256x128xf32> -> vector<256x128xf32>
      %c0_58 = arith.constant 0 : index
      %c0_59 = arith.constant 0 : index
      %56 = vector.load %arg9[%c0_58, %c0_59] : memref<1x128xf32, #tpu.memory_space<vmem>>, vector<1x128xf32>
      %57 = vector.broadcast %56 : vector<1x128xf32> to vector<256x128xf32>
      %58 = arith.addf %55, %57 : vector<256x128xf32>
      %c0_60 = arith.constant 0 : index
      %c0_61 = arith.constant 0 : index
      %c0_62 = arith.constant 0 : index
      %59 = vector.load %arg10[%c0_60, %c0_61, %c0_62] : memref<1x256x128xf32, #tpu.memory_space<vmem>>, vector<1x256x128xf32>
      %60 = vector.shape_cast %59 : vector<1x256x128xf32> to vector<256x128xf32>
      %61 = vector.shape_cast %58 : vector<256x128xf32> to vector<1x256x128xf32>
      tpu.vector_store %arg10[%c0_60, %c0_61, %c0_62], %61 {strides = array<i32>} : memref<1x256x128xf32, #tpu.memory_space<vmem>>, vector<1x256x128xf32>,
    } else {
    }
    return
  }
  func.func @transform_0(%arg0: i32, %arg1: i32, %arg2: i32) -> (i32, i32, i32, i32) {
    %c0_i32 = arith.constant 0 : i32
    %c0_i32_0 = arith.constant 0 : i32
    return %arg0, %arg1, %c0_i32, %arg2 : i32, i32, i32, i32
  }
  func.func @transform_1(%arg0: i32, %arg1: i32, %arg2: i32) -> (i32, i32, i32, i32) {
    %c1_i32 = arith.constant 1 : i32
    %0 = arith.addi %arg1, %c1_i32 : i32
    %c8_i32 = arith.constant 8 : i32
    %1 = arith.muli %0, %c8_i32 : i32
    %c0_i32 = arith.constant 0 : i32
    %c0_i32_0 = arith.constant 0 : i32
    return %arg0, %1, %c0_i32, %arg2 : i32, i32, i32, i32
  }
  func.func @transform_2(%arg0: i32, %arg1: i32, %arg2: i32) -> (i32, i32, i32, i32) {
    %c0_i32 = arith.constant 0 : i32
    %c0_i32_0 = arith.constant 0 : i32
    %c0_i32_1 = arith.constant 0 : i32
    %c0_i32_2 = arith.constant 0 : i32
    return %c0_i32, %arg2, %c0_i32_0, %c0_i32_1 : i32, i32, i32, i32
  }
  func.func @transform_3(%arg0: i32, %arg1: i32, %arg2: i32) -> (i32, i32) {
    %c0_i32 = arith.constant 0 : i32
    %c0_i32_0 = arith.constant 0 : i32
    %c0_i32_1 = arith.constant 0 : i32
    return %c0_i32, %c0_i32_0 : i32, i32
  }
  func.func @transform_4(%arg0: i32, %arg1: i32, %arg2: i32) -> (i32, i32) {
    %c0_i32 = arith.constant 0 : i32
    %c0_i32_0 = arith.constant 0 : i32
    %c0_i32_1 = arith.constant 0 : i32
    return %c0_i32, %c0_i32_0 : i32, i32
  }
  func.func @transform_5(%arg0: i32, %arg1: i32, %arg2: i32) -> (i32, i32) {
    %c0_i32 = arith.constant 0 : i32
    %c0_i32_0 = arith.constant 0 : i32
    %c0_i32_1 = arith.constant 0 : i32
    return %c0_i32, %c0_i32_0 : i32, i32
  }
  func.func @transform_6(%arg0: i32, %arg1: i32, %arg2: i32) -> (i32, i32) {
    %c0_i32 = arith.constant 0 : i32
    %c0_i32_0 = arith.constant 0 : i32
    %c0_i32_1 = arith.constant 0 : i32
    return %c0_i32, %c0_i32_0 : i32, i32
  }
  func.func @transform_7(%arg0: i32, %arg1: i32, %arg2: i32) -> (i32, i32, i32) {
    %c0_i32 = arith.constant 0 : i32
    %c0_i32_0 = arith.constant 0 : i32
    return %arg0, %arg1, %c0_i32 : i32, i32, i32
  }
}

</mosaic_0001>

<llo_original>
// kernel: fcn_head_forward.1
$region0: #{fcn_head_forward.1}
  #allocation0 [shape = 'u32[]', space=smem, size = 0x4, offset = 0x4, fixed_abs, tag = 'smem constant byte address 0x4 - core index']
  #allocation1 [shape = 'u32[144,128]{1,0:T(1,128)}', space=vmem, size = 0x12000, scoped, tag = 'internal scratch']
  #allocation2 [shape = 'bf16[18,16,48]{2,1,0:T(16,128)(2,1)}', space=vmem, size = 0x12000, scoped, tag = 'scratch operand']
  #allocation3 [shape = 'f32[256,32]{1,0:T(8,128)}', space=vmem, size = 0x20000, scoped, tag = 'scratch operand']
  %s0 = inlined_call_operand.vmem [shape: bf16[2,18,18,16], index: 0, kind: input, shape index: {}, may-alias: {0,1}]
  %s1 = inlined_call_operand.vmem [shape: bf16[2,18,18,16], index: 1, kind: input, shape index: {}, may-alias: {0,1}]
  %s2 = inlined_call_operand.vmem [shape: bf16[3,1,48,32], index: 2, kind: input, shape index: {}]
  %s3 = inlined_call_operand.vmem [shape: f32[1,32], index: 3, kind: input, shape index: {}]
  %s4 = inlined_call_operand.vmem [shape: f32[1,32], index: 4, kind: input, shape index: {}]
  %s5 = inlined_call_operand.vmem [shape: bf16[32,128], index: 5, kind: input, shape index: {}]
  %s6 = inlined_call_operand.vmem [shape: f32[1,128], index: 6, kind: input, shape index: {}]
  %s7 = inlined_call_operand.vmem [shape: f32[2,256,128], index: 7, kind: output, shape index: {}]
  %s8 = sld [smem:[#allocation0]]
  $region69: #{fcn_head_forward.1} parent=0
    _
  %s10 = ssub.s32 1, %s8
  %s11 = scalar_select 0, %s10, %s8
  loop: start=0, step=1, limit=4
  $region2: #{fcn_head_forward.1} parent=0 // loop_pre_header
    _
  $region3: #{fcn_head_forward.1} parent=0 // loop_header
    %s13 = sphi 0, %s17
    %p14 = scmp.ge.s32.totalorder %s13, 4
    %s20 = sphi 0, %s39
    %s21 = sphi 0, %s35
    %s22 = sphi 0, %s31
    %s23 = sphi 0, %s20
    %s24 = sphi 0, %s21
    %s25 = sphi 0, %s22
    %s26 = sphi 0, %s23
    %s27 = sphi 0, %s24
    %s28 = sphi 0, %s25
    %s46 = sphi 0, %s48
    %s49 = sphi 0, %s46
    %s50 = sphi 0, %s49
    %s66 = sphi 0, %s50
    %s80 = sphi 0, %s82
    %s83 = sphi 0, %s80
    %s84 = sphi 0, %s83
    %s100 = sphi 0, %s84
    %s106 = sphi 0, %s108
    %s109 = sphi 0, %s106
    %s110 = sphi 0, %s109
    %s126 = sphi 0, %s110
    %s130 = sphi 0, %s130
    %s132 = sphi 0, %s130
    %s133 = sphi 0, %s132
    %s147 = sphi 0, %s133
    %s151 = sphi 0, %s151
    %s153 = sphi 0, %s151
    %s154 = sphi 0, %s153
    %s168 = sphi 0, %s154
    %s172 = sphi 0, %s172
    %s174 = sphi 0, %s172
    %s175 = sphi 0, %s174
    %s189 = sphi 0, %s175
    %s193 = sphi 0, %s193
    %s195 = sphi 0, %s193
    %s196 = sphi 0, %s195
    %s210 = sphi 0, %s196
    %s218 = sphi 0, %s220
    %s221 = sphi 0, %s218
    %s222 = sphi 0, %s221
    %s238 = sphi 0, %s222
  $region4: #{fcn_head_forward.1} parent=0 // loop_header_branch
    %16 = sbr.rel (%p14) target = $region8
  $region5: #{fcn_head_forward.1} parent=0 // loop_body
    %s18 = ssub.s32 %s13, 1
    %s19 = ssub.s32 %s13, 2
    %s29 = sadd.s32 1, %s22
    %p30 = scmp.ge.s32.totalorder %s29, 1
    %s31 = scalar_select %p30, 0, %s29
    %s32 = sadd.s32 1, %s21
    %s33 = scalar_select %p30, %s32, %s21
    %p34 = scmp.ge.s32.totalorder %s33, 1
    %s35 = scalar_select %p34, 0, %s33
    %s36 = sadd.s32 1, %s20
    %s37 = scalar_select %p34, %s36, %s20
    %p38 = scmp.ge.s32.totalorder %s37, 2
    %s39 = scalar_select %p38, 0, %s37
    %s40 = ssub.s32 %s20, %s39
    %s41 = ssub.s32 %s21, %s35
    %s42 = sor.u32 %s40, %s41
    %s43 = ssub.s32 %s22, %s31
    %s44 = sor.u32 %s42, %s43
    %p45 = scmp.eq.s32.totalorder %s44, 0
    %s47 = sadd.s32 %s46, 1
    %s48 = scalar_select %p45, %s46, %s47
    %p51 = pneg %p45
    %p52 = scmp.eq.s32.totalorder %s13, 1
    %p53 = por %p51, %p52
    %p54 = scmp.ne.s32.totalorder %s46, %s49
    %p55 = scmp.eq.s32.totalorder %s13, 0
    %p56 = por %p54, %p55
    %p57 = scmp.ne.s32.totalorder %s46, %s49
    %p58 = scmp.eq.s32.totalorder %s18, 1
    %p59 = por %p57, %p58
    %p60 = scmp.ne.s32.totalorder %s49, %s50
    %p61 = scmp.eq.s32.totalorder %s18, 0
    %p62 = por %p60, %p61
    %p63 = scmp.ne.s32.totalorder %s49, %s50
    %p64 = scmp.eq.s32.totalorder %s19, 1
    %p65 = por %p63, %p64
    %p67 = scmp.ne.s32.totalorder %s50, %s66
    %p68 = scmp.eq.s32.totalorder %s19, 0
    %p69 = por %p67, %p68
    %s70 = sadd.s32 %s21, 1
    %s71 = smul.u32 %s70, 8
    %s72 = sadd.s32 %s35, 1
    %s73 = smul.u32 %s72, 8
    %s74 = ssub.s32 %s20, %s39
    %s75 = ssub.s32 %s71, %s73
    %s76 = sor.u32 %s74, %s75
    %s77 = ssub.s32 %s22, %s31
    %s78 = sor.u32 %s76, %s77
    %p79 = scmp.eq.s32.totalorder %s78, 0
    %s81 = sadd.s32 %s80, 1
    %s82 = scalar_select %p79, %s80, %s81
    %p85 = pneg %p79
    %p86 = scmp.eq.s32.totalorder %s13, 1
    %p87 = por %p85, %p86
    %p88 = scmp.ne.s32.totalorder %s80, %s83
    %p89 = scmp.eq.s32.totalorder %s13, 0
    %p90 = por %p88, %p89
    %p91 = scmp.ne.s32.totalorder %s80, %s83
    %p92 = scmp.eq.s32.totalorder %s18, 1
    %p93 = por %p91, %p92
    %p94 = scmp.ne.s32.totalorder %s83, %s84
    %p95 = scmp.eq.s32.totalorder %s18, 0
    %p96 = por %p94, %p95
    %p97 = scmp.ne.s32.totalorder %s83, %s84
    %p98 = scmp.eq.s32.totalorder %s19, 1
    %p99 = por %p97, %p98
    %p101 = scmp.ne.s32.totalorder %s84, %s100
    %p102 = scmp.eq.s32.totalorder %s19, 0
    %p103 = por %p101, %p102
    %s104 = ssub.s32 %s22, %s31
    %p105 = scmp.eq.s32.totalorder %s104, 0
    %s107 = sadd.s32 %s106, 1
    %s108 = scalar_select %p105, %s106, %s107
    %p111 = pneg %p105
    %p112 = scmp.eq.s32.totalorder %s13, 1
    %p113 = por %p111, %p112
    %p114 = scmp.ne.s32.totalorder %s106, %s109
    %p115 = scmp.eq.s32.totalorder %s13, 0
    %p116 = por %p114, %p115
    %p117 = scmp.ne.s32.totalorder %s106, %s109
    %p118 = scmp.eq.s32.totalorder %s18, 1
    %p119 = por %p117, %p118
    %p120 = scmp.ne.s32.totalorder %s109, %s110
    %p121 = scmp.eq.s32.totalorder %s18, 0
    %p122 = por %p120, %p121
    %p123 = scmp.ne.s32.totalorder %s109, %s110
    %p124 = scmp.eq.s32.totalorder %s19, 1
    %p125 = por %p123, %p124
    %p127 = scmp.ne.s32.totalorder %s110, %s126
    %p128 = scmp.eq.s32.totalorder %s19, 0
    %p129 = por %p127, %p128
    %s131 = sadd.s32 %s130, 1
    %p134 = scmp.eq.s32.totalorder %s13, 1
    %p135 = scmp.ne.s32.totalorder %s130, %s132
    %p136 = scmp.eq.s32.totalorder %s13, 0
    %p137 = por %p135, %p136
    %p138 = scmp.ne.s32.totalorder %s130, %s132
    %p139 = scmp.eq.s32.totalorder %s18, 1
    %p140 = por %p138, %p139
    %p141 = scmp.ne.s32.totalorder %s132, %s133
    %p142 = scmp.eq.s32.totalorder %s18, 0
    %p143 = por %p141, %p142
    %p144 = scmp.ne.s32.totalorder %s132, %s133
    %p145 = scmp.eq.s32.totalorder %s19, 1
    %p146 = por %p144, %p145
    %p148 = scmp.ne.s32.totalorder %s133, %s147
    %p149 = scmp.eq.s32.totalorder %s19, 0
    %p150 = por %p148, %p149
    %s152 = sadd.s32 %s151, 1
    %p155 = scmp.eq.s32.totalorder %s13, 1
    %p156 = scmp.ne.s32.totalorder %s151, %s153
    %p157 = scmp.eq.s32.totalorder %s13, 0
    %p158 = por %p156, %p157
    %p159 = scmp.ne.s32.totalorder %s151, %s153
    %p160 = scmp.eq.s32.totalorder %s18, 1
    %p161 = por %p159, %p160
    %p162 = scmp.ne.s32.totalorder %s153, %s154
    %p163 = scmp.eq.s32.totalorder %s18, 0
    %p164 = por %p162, %p163
    %p165 = scmp.ne.s32.totalorder %s153, %s154
    %p166 = scmp.eq.s32.totalorder %s19, 1
    %p167 = por %p165, %p166
    %p169 = scmp.ne.s32.totalorder %s154, %s168
    %p170 = scmp.eq.s32.totalorder %s19, 0
    %p171 = por %p169, %p170
    %s173 = sadd.s32 %s172, 1
    %p176 = scmp.eq.s32.totalorder %s13, 1
    %p177 = scmp.ne.s32.totalorder %s172, %s174
    %p178 = scmp.eq.s32.totalorder %s13, 0
    %p179 = por %p177, %p178
    %p180 = scmp.ne.s32.totalorder %s172, %s174
    %p181 = scmp.eq.s32.totalorder %s18, 1
    %p182 = por %p180, %p181
    %p183 = scmp.ne.s32.totalorder %s174, %s175
    %p184 = scmp.eq.s32.totalorder %s18, 0
    %p185 = por %p183, %p184
    %p186 = scmp.ne.s32.totalorder %s174, %s175
    %p187 = scmp.eq.s32.totalorder %s19, 1
    %p188 = por %p186, %p187
    %p190 = scmp.ne.s32.totalorder %s175, %s189
    %p191 = scmp.eq.s32.totalorder %s19, 0
    %p192 = por %p190, %p191
    %s194 = sadd.s32 %s193, 1
    %p197 = scmp.eq.s32.totalorder %s13, 1
    %p198 = scmp.ne.s32.totalorder %s193, %s195
    %p199 = scmp.eq.s32.totalorder %s13, 0
    %p200 = por %p198, %p199
    %p201 = scmp.ne.s32.totalorder %s193, %s195
    %p202 = scmp.eq.s32.totalorder %s18, 1
    %p203 = por %p201, %p202
    %p204 = scmp.ne.s32.totalorder %s195, %s196
    %p205 = scmp.eq.s32.totalorder %s18, 0
    %p206 = por %p204, %p205
    %p207 = scmp.ne.s32.totalorder %s195, %s196
    %p208 = scmp.eq.s32.totalorder %s19, 1
    %p209 = por %p207, %p208
    %p211 = scmp.ne.s32.totalorder %s196, %s210
    %p212 = scmp.eq.s32.totalorder %s19, 0
    %p213 = por %p211, %p212
    %s214 = ssub.s32 %s20, %s39
    %s215 = ssub.s32 %s21, %s35
    %s216 = sor.u32 %s214, %s215
    %p217 = scmp.eq.s32.totalorder %s216, 0
    %s219 = sadd.s32 %s218, 1
    %s220 = scalar_select %p217, %s218, %s219
    %p223 = pneg %p217
    %p224 = scmp.eq.s32.totalorder %s13, 1
    %p225 = por %p223, %p224
    %p226 = scmp.ne.s32.totalorder %s218, %s221
    %p227 = scmp.eq.s32.totalorder %s13, 0
    %p228 = por %p226, %p227
    %p229 = scmp.ne.s32.totalorder %s218, %s221
    %p230 = scmp.eq.s32.totalorder %s18, 1
    %p231 = por %p229, %p230
    %p232 = scmp.ne.s32.totalorder %s221, %s222
    %p233 = scmp.eq.s32.totalorder %s18, 0
    %p234 = por %p232, %p233
    %p235 = scmp.ne.s32.totalorder %s221, %s222
    %p236 = scmp.eq.s32.totalorder %s19, 1
    %p237 = por %p235, %p236
    %p239 = scmp.ne.s32.totalorder %s222, %s238
    %p240 = scmp.eq.s32.totalorder %s19, 0
    %p241 = por %p239, %p240
    %p242 = scmp.le.s32.totalorder 1, %s13
    %p243 = scmp.lt.s32.totalorder %s13, 3
    %p244 = pnand %p242, %p243
    %p245 = pneg %p244
    // Predicated region
    $region9: #{fcn_head_forward.1} parent=5 // pred_check
      _
    $region10: #{fcn_head_forward.1} parent=5 // pred_check_branch
      %247 = sbr.rel (%p244) target = $region12
    $region11: #{fcn_head_forward.1} parent=5 // pred_region
      %s248 = ssub.s32 %s13, 1
      // Predicated region
      $region13: #{fcn_head_forward.1} parent=11 // pred_check
        %p249 = pneg %p122
      $region14: #{fcn_head_forward.1} parent=11 // pred_check_branch
        %251 = sbr.rel (%p249) target = $region16
      $region15: #{fcn_head_forward.1} parent=11 // pred_region
        %p252 = scmp.lt.s32.totalorder %s25, 0
        %s253 = scalar_select %p252, %s25, 0
        %s254 = smul.addr %s253, 6
        %s255 = smul.addr %s254, 4
        %s256 = scalar_lea.vmem %s2, %s255
      $region16: #{fcn_head_forward.1} parent=11 // pred_fallthru
        _
      // Predicated region
      $region17: #{fcn_head_forward.1} parent=11 // pred_check
        %p257 = pneg %p143
      $region18: #{fcn_head_forward.1} parent=11 // pred_check_branch
        %259 = sbr.rel (%p257) target = $region20
      $region19: #{fcn_head_forward.1} parent=11 // pred_region
        _
      $region20: #{fcn_head_forward.1} parent=11 // pred_fallthru
        _
      // Predicated region
      $region21: #{fcn_head_forward.1} parent=11 // pred_check
        %p260 = pneg %p164
      $region22: #{fcn_head_forward.1} parent=11 // pred_check_branch
        %262 = sbr.rel (%p260) target = $region24
      $region23: #{fcn_head_forward.1} parent=11 // pred_region
        _
      $region24: #{fcn_head_forward.1} parent=11 // pred_fallthru
        _
      // Predicated region
      $region25: #{fcn_head_forward.1} parent=11 // pred_check
        %p263 = pneg %p185
      $region26: #{fcn_head_forward.1} parent=11 // pred_check_branch
        %265 = sbr.rel (%p263) target = $region28
      $region27: #{fcn_head_forward.1} parent=11 // pred_region
        _
      $region28: #{fcn_head_forward.1} parent=11 // pred_fallthru
        _
      // Predicated region
      $region29: #{fcn_head_forward.1} parent=11 // pred_check
        %p266 = pneg %p206
      $region30: #{fcn_head_forward.1} parent=11 // pred_check_branch
        %268 = sbr.rel (%p266) target = $region32
      $region31: #{fcn_head_forward.1} parent=11 // pred_region
        _
      $region32: #{fcn_head_forward.1} parent=11 // pred_fallthru
        _
    $region12: #{fcn_head_forward.1} parent=5 // pred_fallthru
      _
    %p269 = scmp.lt.s32.totalorder %s13, 2
    // Predicated region
    $region33: #{fcn_head_forward.1} parent=5 // pred_check
      %p270 = pneg %p269
    $region34: #{fcn_head_forward.1} parent=5 // pred_check_branch
      %272 = sbr.rel (%p270) target = $region36
    $region35: #{fcn_head_forward.1} parent=5 // pred_region
      // Predicated region
      $region37: #{fcn_head_forward.1} parent=35 // pred_check
        %p273 = pneg %p56
      $region38: #{fcn_head_forward.1} parent=35 // pred_check_branch
        %275 = sbr.rel (%p273) target = $region40
      $region39: #{fcn_head_forward.1} parent=35 // pred_region
        %s276 = smul.u32 16, %s21
        %s277 = ssub.s32 18, %s276
        %p278 = scmp.lt.s32.totalorder %s277, 16
        %s279 = scalar_select %p278, %s277, 16
        %s280 = smul.u32 64, %s279
        %s281 = smul.u32 %s280, 3
        %p282 = scmp.lt.s32.totalorder %s20, 1
        %s283 = scalar_select %p282, %s20, 1
        %p284 = scmp.lt.s32.totalorder %s276, 17
        %s285 = scalar_select %p284, %s276, 17
        %p286 = scmp.lt.s32.totalorder %s22, 0
        %s287 = scalar_select %p286, %s22, 0
        %s288 = smul.addr %s285, 3
        %s289 = sadd.s32 %s287, %s288
        %s290 = smul.addr %s283, 54
        %s291 = sadd.s32 %s289, %s290
        %s292 = smul.addr %s291, 4
        %s293 = scalar_lea.vmem %s0, %s292
        %s294 = smul.u32 16, %s21
        %s295 = ssub.s32 18, %s294
        %p296 = scmp.lt.s32.totalorder %s295, 16
        %s297 = scalar_select %p296, %s295, 16
        %s298 = smul.u32 64, %s297
        %s299 = smul.u32 %s298, 3
      $region40: #{fcn_head_forward.1} parent=35 // pred_fallthru
        _
      // Predicated region
      $region41: #{fcn_head_forward.1} parent=35 // pred_check
        %p300 = pneg %p90
      $region42: #{fcn_head_forward.1} parent=35 // pred_check_branch
        %302 = sbr.rel (%p300) target = $region44
      $region43: #{fcn_head_forward.1} parent=35 // pred_region
        %s303 = sadd.s32 %s21, 1
        %s304 = smul.u32 %s303, 8
        %s305 = smul.u32 2, %s304
        %p306 = scmp.lt.s32.totalorder %s20, 1
        %s307 = scalar_select %p306, %s20, 1
        %p308 = scmp.lt.s32.totalorder %s305, 17
        %s309 = scalar_select %p308, %s305, 17
        %p310 = scmp.lt.s32.totalorder %s22, 0
        %s311 = scalar_select %p310, %s22, 0
        %s312 = smul.addr %s309, 3
        %s313 = sadd.s32 %s311, %s312
        %s314 = smul.addr %s307, 54
        %s315 = sadd.s32 %s313, %s314
        %s316 = smul.addr %s315, 4
        %s317 = scalar_lea.vmem %s1, %s316
        %s318 = sadd.s32 %s21, 1
        %s319 = smul.u32 %s318, 8
        %s320 = smul.u32 2, %s319
      $region44: #{fcn_head_forward.1} parent=35 // pred_fallthru
        _
    $region36: #{fcn_head_forward.1} parent=5 // pred_fallthru
      _
    %p321 = scmp.le.s32.totalorder 1, %s13
    %p322 = scmp.lt.s32.totalorder %s13, 3
    %p323 = pnand %p321, %p322
    %p324 = pneg %p323
    // Predicated region
    $region45: #{fcn_head_forward.1} parent=5 // pred_check
      _
    $region46: #{fcn_head_forward.1} parent=5 // pred_check_branch
      %326 = sbr.rel (%p323) target = $region48
    $region47: #{fcn_head_forward.1} parent=5 // pred_region
      %s327 = ssub.s32 %s13, 1
      %s328 = smul.u32 16, %s24
      %s329 = ssub.s32 18, %s328
      %p330 = scmp.lt.s32.totalorder %s329, 16
      %s331 = scalar_select %p330, %s329, 16
      %s332 = smul.u32 64, %s331
      %s333 = smul.u32 %s332, 3
      %p334 = scmp.lt.s32.totalorder %s23, 1
      %s335 = scalar_select %p334, %s23, 1
      %p336 = scmp.lt.s32.totalorder %s328, 17
      %s337 = scalar_select %p336, %s328, 17
      %p338 = scmp.lt.s32.totalorder %s25, 0
      %s339 = scalar_select %p338, %s25, 0
      %s340 = smul.addr %s337, 3
      %s341 = sadd.s32 %s339, %s340
      %s342 = smul.addr %s335, 54
      %s343 = sadd.s32 %s341, %s342
      %s344 = smul.addr %s343, 4
      %s345 = scalar_lea.vmem %s0, %s344
      %p346 = pneg %p62
      %p347 = pneg %p59
      %s348 = sadd.s32 %s24, 1
      %s349 = smul.u32 %s348, 8
      %s350 = smul.u32 2, %s349
      %p351 = scmp.lt.s32.totalorder %s23, 1
      %s352 = scalar_select %p351, %s23, 1
      %p353 = scmp.lt.s32.totalorder %s350, 17
      %s354 = scalar_select %p353, %s350, 17
      %p355 = scmp.lt.s32.totalorder %s25, 0
      %s356 = scalar_select %p355, %s25, 0
      %s357 = smul.addr %s354, 3
      %s358 = sadd.s32 %s356, %s357
      %s359 = smul.addr %s352, 54
      %s360 = sadd.s32 %s358, %s359
      %s361 = smul.addr %s360, 4
      %s362 = scalar_lea.vmem %s1, %s361
      %p363 = pneg %p96
      %p364 = pneg %p93
      %p365 = scmp.lt.s32.totalorder %s25, 0
      %s366 = scalar_select %p365, %s25, 0
      %s367 = smul.addr %s366, 6
      %s368 = smul.addr %s367, 4
      %s369 = scalar_lea.vmem %s2, %s368
      %p370 = pneg %p122
      %p371 = pneg %p119
      %p372 = pneg %p143
      %p373 = pneg %p140
      %p374 = pneg %p164
      %p375 = pneg %p161
      %p376 = pneg %p185
      %p377 = pneg %p182
      %p378 = pneg %p206
      %p379 = pneg %p203
      %p380 = pneg %p234
      %p381 = pneg %p231
      %s382 = smul.u32 32, %s24
      %p383 = scmp.lt.s32.totalorder %s23, 1
      %s384 = scalar_select %p383, %s23, 1
      %p385 = scmp.lt.s32.totalorder %s382, 31
      %s386 = scalar_select %p385, %s382, 31
      %s387 = smul.addr %s384, 32
      %s388 = sadd.s32 %s386, %s387
      %s389 = smul.addr %s388, 8
      %s390 = scalar_lea.vmem %s7, %s389
      %s391 = smul.u32 16, %s24
      %s392 = ssub.s32 18, %s391
      %p393 = scmp.lt.s32.totalorder %s392, 16
      %s394 = scalar_select %p393, %s392, 16
      %s395 = smul.u32 64, %s394
      %s396 = smul.u32 %s395, 3
      %p397 = scmp.lt.s32.totalorder %s23, 1
      %s398 = scalar_select %p397, %s23, 1
      %p399 = scmp.lt.s32.totalorder %s391, 17
      %s400 = scalar_select %p399, %s391, 17
      %p401 = scmp.lt.s32.totalorder %s25, 0
      %s402 = scalar_select %p401, %s25, 0
      %s403 = smul.addr %s400, 3
      %s404 = sadd.s32 %s402, %s403
      %s405 = smul.addr %s398, 54
      %s406 = sadd.s32 %s404, %s405
      %s407 = smul.addr %s406, 4
      %s408 = scalar_lea.vmem %s0, %s407
      %s409 = smul.u32 16, %s24
      %s410 = ssub.s32 18, %s409
      %p411 = scmp.lt.s32.totalorder %s410, 16
      %s412 = scalar_select %p411, %s410, 16
      %s413 = smul.u32 64, %s412
      %s414 = smul.u32 %s413, 3
      %s415 = sadd.s32 %s24, 1
      %s416 = smul.u32 %s415, 8
      %s417 = smul.u32 2, %s416
      %p418 = scmp.lt.s32.totalorder %s23, 1
      %s419 = scalar_select %p418, %s23, 1
      %p420 = scmp.lt.s32.totalorder %s417, 17
      %s421 = scalar_select %p420, %s417, 17
      %p422 = scmp.lt.s32.totalorder %s25, 0
      %s423 = scalar_select %p422, %s25, 0
      %s424 = smul.addr %s421, 3
      %s425 = sadd.s32 %s423, %s424
      %s426 = smul.addr %s419, 54
      %s427 = sadd.s32 %s425, %s426
      %s428 = smul.addr %s427, 4
      %s429 = scalar_lea.vmem %s1, %s428
      %s430 = sadd.s32 %s24, 1
      %s431 = smul.u32 %s430, 8
      %s432 = smul.u32 2, %s431
      %p433 = scmp.lt.s32.totalorder %s25, 0
      %s434 = scalar_select %p433, %s25, 0
      %s435 = smul.addr %s434, 6
      %s436 = smul.addr %s435, 4
      %s437 = scalar_lea.vmem %s2, %s436
      %s438 = smul.u32 32, %s24
      %p439 = scmp.lt.s32.totalorder %s23, 1
      %s440 = scalar_select %p439, %s23, 1
      %p441 = scmp.lt.s32.totalorder %s438, 31
      %s442 = scalar_select %p441, %s438, 31
      %s443 = smul.addr %s440, 32
      %s444 = sadd.s32 %s442, %s443
      %s445 = smul.addr %s444, 8
      %s446 = scalar_lea.vmem %s7, %s445
      %s447 = smul.u32 32, %s24
      %p449 = scmp.eq.s32.totalorder %s25, 0
      // Predicated region
      $region49: #{fcn_head_forward.1} parent=47 // pred_check
        %p450 = pneg %p449
      $region50: #{fcn_head_forward.1} parent=47 // pred_check_branch
        %452 = sbr.rel (%p450) target = $region52
      $region51: #{fcn_head_forward.1} parent=47 // pred_region
        %vm453 = vcmask 261120
        %454 = vst.msk [vmem:[#allocation3] sm:$0xff] %vm453, 0.0
        %455 = vst.msk [vmem:[#allocation3 + $0x8] sm:$0xff] %vm453, 0.0
        %456 = vst.msk [vmem:[#allocation3 + $0x10] sm:$0xff] %vm453, 0.0
        %457 = vst.msk [vmem:[#allocation3 + $0x18] sm:$0xff] %vm453, 0.0
        %458 = vst.msk [vmem:[#allocation3 + $0x20] sm:$0xff] %vm453, 0.0
        %459 = vst.msk [vmem:[#allocation3 + $0x28] sm:$0xff] %vm453, 0.0
        %460 = vst.msk [vmem:[#allocation3 + $0x30] sm:$0xff] %vm453, 0.0
        %461 = vst.msk [vmem:[#allocation3 + $0x38] sm:$0xff] %vm453, 0.0
        %462 = vst.msk [vmem:[#allocation3 + $0x40] sm:$0xff] %vm453, 0.0
        %463 = vst.msk [vmem:[#allocation3 + $0x48] sm:$0xff] %vm453, 0.0
        %464 = vst.msk [vmem:[#allocation3 + $0x50] sm:$0xff] %vm453, 0.0
        %465 = vst.msk [vmem:[#allocation3 + $0x58] sm:$0xff] %vm453, 0.0
        %466 = vst.msk [vmem:[#allocation3 + $0x60] sm:$0xff] %vm453, 0.0
        %467 = vst.msk [vmem:[#allocation3 + $0x68] sm:$0xff] %vm453, 0.0
        %468 = vst.msk [vmem:[#allocation3 + $0x70] sm:$0xff] %vm453, 0.0
        %469 = vst.msk [vmem:[#allocation3 + $0x78] sm:$0xff] %vm453, 0.0
        %470 = vst.msk [vmem:[#allocation3 + $0x80] sm:$0xff] %vm453, 0.0
        %471 = vst.msk [vmem:[#allocation3 + $0x88] sm:$0xff] %vm453, 0.0
        %472 = vst.msk [vmem:[#allocation3 + $0x90] sm:$0xff] %vm453, 0.0
        %473 = vst.msk [vmem:[#allocation3 + $0x98] sm:$0xff] %vm453, 0.0
        %474 = vst.msk [vmem:[#allocation3 + $0xa0] sm:$0xff] %vm453, 0.0
        %475 = vst.msk [vmem:[#allocation3 + $0xa8] sm:$0xff] %vm453, 0.0
        %476 = vst.msk [vmem:[#allocation3 + $0xb0] sm:$0xff] %vm453, 0.0
        %477 = vst.msk [vmem:[#allocation3 + $0xb8] sm:$0xff] %vm453, 0.0
        %478 = vst.msk [vmem:[#allocation3 + $0xc0] sm:$0xff] %vm453, 0.0
        %479 = vst.msk [vmem:[#allocation3 + $0xc8] sm:$0xff] %vm453, 0.0
        %480 = vst.msk [vmem:[#allocation3 + $0xd0] sm:$0xff] %vm453, 0.0
        %481 = vst.msk [vmem:[#allocation3 + $0xd8] sm:$0xff] %vm453, 0.0
        %482 = vst.msk [vmem:[#allocation3 + $0xe0] sm:$0xff] %vm453, 0.0
        %483 = vst.msk [vmem:[#allocation3 + $0xe8] sm:$0xff] %vm453, 0.0
        %484 = vst.msk [vmem:[#allocation3 + $0xf0] sm:$0xff] %vm453, 0.0
        %485 = vst.msk [vmem:[#allocation3 + $0xf8] sm:$0xff] %vm453, 0.0
      $region52: #{fcn_head_forward.1} parent=47 // pred_fallthru
        _
      %v486 = vld [vmem:[%s408] sm:$0xf]
      %v487 = vld [vmem:[%s408 + $0x4] sm:$0xf]
      %v488 = vld [vmem:[%s408 + $0x8] sm:$0x1]
      %v489 = vld [vmem:[%s408 + $0xc] sm:$0xf]
      %v490 = vld [vmem:[%s408 + $0x10] sm:$0xf]
      %v491 = vld [vmem:[%s408 + $0x14] sm:$0x1]
      %v492 = vld [vmem:[%s408 + $0x18] sm:$0xf]
      %v493 = vld [vmem:[%s408 + $0x1c] sm:$0xf]
      %v494 = vld [vmem:[%s408 + $0x20] sm:$0x1]
      %v495 = vld [vmem:[%s408 + $0x24] sm:$0xf]
      %v496 = vld [vmem:[%s408 + $0x28] sm:$0xf]
      %v497 = vld [vmem:[%s408 + $0x2c] sm:$0x1]
      %v498 = vld [vmem:[%s408 + $0x30] sm:$0xf]
      %v499 = vld [vmem:[%s408 + $0x34] sm:$0xf]
      %v500 = vld [vmem:[%s408 + $0x38] sm:$0x1]
      %v501 = vld [vmem:[%s408 + $0x3c] sm:$0xf]
      %v502 = vld [vmem:[%s408 + $0x40] sm:$0xf]
      %v503 = vld [vmem:[%s408 + $0x44] sm:$0x1]
      %v504 = vld [vmem:[%s408 + $0x48] sm:$0xf]
      %v505 = vld [vmem:[%s408 + $0x4c] sm:$0xf]
      %v506 = vld [vmem:[%s408 + $0x50] sm:$0x1]
      %v507 = vld [vmem:[%s408 + $0x54] sm:$0xf]
      %v508 = vld [vmem:[%s408 + $0x58] sm:$0xf]
      %v509 = vld [vmem:[%s408 + $0x5c] sm:$0x1]
      %v510 = vld [vmem:[%s408 + $0x60] sm:$0xf]
      %v511 = vld [vmem:[%s408 + $0x64] sm:$0xf]
      %v512 = vld [vmem:[%s408 + $0x68] sm:$0x1]
      %v513 = vld [vmem:[%s408 + $0x6c] sm:$0xf]
      %v514 = vld [vmem:[%s408 + $0x70] sm:$0xf]
      %v515 = vld [vmem:[%s408 + $0x74] sm:$0x1]
      %v516 = vld [vmem:[%s408 + $0x78] sm:$0xf]
      %v517 = vld [vmem:[%s408 + $0x7c] sm:$0xf]
      %v518 = vld [vmem:[%s408 + $0x80] sm:$0x1]
      %v519 = vld [vmem:[%s408 + $0x84] sm:$0xf]
      %v520 = vld [vmem:[%s408 + $0x88] sm:$0xf]
      %v521 = vld [vmem:[%s408 + $0x8c] sm:$0x1]
      %v522 = vld [vmem:[%s408 + $0x90] sm:$0xf]
      %v523 = vld [vmem:[%s408 + $0x94] sm:$0xf]
      %v524 = vld [vmem:[%s408 + $0x98] sm:$0x1]
      %v525 = vld [vmem:[%s408 + $0x9c] sm:$0xf]
      %v526 = vld [vmem:[%s408 + $0xa0] sm:$0xf]
      %v527 = vld [vmem:[%s408 + $0xa4] sm:$0x1]
      %v528 = vld [vmem:[%s408 + $0xa8] sm:$0xf]
      %v529 = vld [vmem:[%s408 + $0xac] sm:$0xf]
      %v530 = vld [vmem:[%s408 + $0xb0] sm:$0x1]
      %v531 = vld [vmem:[%s408 + $0xb4] sm:$0xf]
      %v532 = vld [vmem:[%s408 + $0xb8] sm:$0xf]
      %v533 = vld [vmem:[%s408 + $0xbc] sm:$0x1]
      %v566 = vunpack.c.l.b16 %v486
      %v567 = vunpack.c.l.b16 %v487
      %v568 = vunpack.c.l.b16 %v489
      %v569 = vunpack.c.l.b16 %v490
      %v570 = vunpack.c.l.b16 %v492
      %v571 = vunpack.c.l.b16 %v493
      %v572 = vunpack.c.l.b16 %v495
      %v573 = vunpack.c.l.b16 %v496
      %v574 = vunpack.c.l.b16 %v498
      %v575 = vunpack.c.l.b16 %v499
      %v576 = vunpack.c.l.b16 %v501
      %v577 = vunpack.c.l.b16 %v502
      %v578 = vunpack.c.l.b16 %v504
      %v579 = vunpack.c.l.b16 %v505
      %v580 = vunpack.c.l.b16 %v507
      %v581 = vunpack.c.l.b16 %v508
      %v582 = vunpack.c.l.b16 %v510
      %v583 = vunpack.c.l.b16 %v511
      %v584 = vunpack.c.l.b16 %v513
      %v585 = vunpack.c.l.b16 %v514
      %v586 = vunpack.c.l.b16 %v516
      %v587 = vunpack.c.l.b16 %v517
      %v588 = vunpack.c.l.b16 %v519
      %v589 = vunpack.c.l.b16 %v520
      %v590 = vunpack.c.l.b16 %v522
      %v591 = vunpack.c.l.b16 %v523
      %v592 = vunpack.c.l.b16 %v525
      %v593 = vunpack.c.l.b16 %v526
      %v594 = vunpack.c.l.b16 %v528
      %v595 = vunpack.c.l.b16 %v529
      %v596 = vunpack.c.l.b16 %v531
      %v597 = vunpack.c.l.b16 %v532
      %v598 = vpack.c.b16 %v567, %v566
      %v599 = vpack.c.b16 %v569, %v568
      %v600 = vpack.c.b16 %v571, %v570
      %v601 = vpack.c.b16 %v573, %v572
      %v602 = vpack.c.b16 %v575, %v574
      %v603 = vpack.c.b16 %v577, %v576
      %v604 = vpack.c.b16 %v579, %v578
      %v605 = vpack.c.b16 %v581, %v580
      %v606 = vpack.c.b16 %v583, %v582
      %v607 = vpack.c.b16 %v585, %v584
      %v608 = vpack.c.b16 %v587, %v586
      %v609 = vpack.c.b16 %v589, %v588
      %v610 = vpack.c.b16 %v591, %v590
      %v611 = vpack.c.b16 %v593, %v592
      %v612 = vpack.c.b16 %v595, %v594
      %v613 = vpack.c.b16 %v597, %v596
      %v630 = vunpack.c.l.b16 %v488
      %v631 = vunpack.c.l.b16 %v491
      %v632 = vunpack.c.l.b16 %v494
      %v633 = vunpack.c.l.b16 %v497
      %v634 = vunpack.c.l.b16 %v500
      %v635 = vunpack.c.l.b16 %v503
      %v636 = vunpack.c.l.b16 %v506
      %v637 = vunpack.c.l.b16 %v509
      %v638 = vunpack.c.l.b16 %v512
      %v639 = vunpack.c.l.b16 %v515
      %v640 = vunpack.c.l.b16 %v518
      %v641 = vunpack.c.l.b16 %v521
      %v642 = vunpack.c.l.b16 %v524
      %v643 = vunpack.c.l.b16 %v527
      %v644 = vunpack.c.l.b16 %v530
      %v645 = vunpack.c.l.b16 %v533
      %v646 = vpack.c.b16 %v630, %v630
      %v647 = vpack.c.b16 %v631, %v631
      %v648 = vpack.c.b16 %v632, %v632
      %v649 = vpack.c.b16 %v633, %v633
      %v650 = vpack.c.b16 %v634, %v634
      %v651 = vpack.c.b16 %v635, %v635
      %v652 = vpack.c.b16 %v636, %v636
      %v653 = vpack.c.b16 %v637, %v637
      %v654 = vpack.c.b16 %v638, %v638
      %v655 = vpack.c.b16 %v639, %v639
      %v656 = vpack.c.b16 %v640, %v640
      %v657 = vpack.c.b16 %v641, %v641
      %v658 = vpack.c.b16 %v642, %v642
      %v659 = vpack.c.b16 %v643, %v643
      %v660 = vpack.c.b16 %v644, %v644
      %v661 = vpack.c.b16 %v645, %v645
      %vm662 = vsmask.f32 7424
      %v664 = vshrl.u32 %v598, 16
      %v666 = vshll.u32 %v598, 16
      %v668 = vrot.slane %v666, 1
      %v669 = vor.u32 %v664, %v668
      %v671 = vshll.u32 %v646, 16
      %v673 = vrot.slane %v671, 1
      %v674 = vsel %vm662, %v669, %v673
      %v676 = vshrl.u32 %v599, 16
      %v678 = vshll.u32 %v599, 16
      %v680 = vrot.slane %v678, 1
      %v681 = vor.u32 %v676, %v680
      %v683 = vshll.u32 %v647, 16
      %v685 = vrot.slane %v683, 1
      %v686 = vsel %vm662, %v681, %v685
      %v688 = vshrl.u32 %v600, 16
      %v690 = vshll.u32 %v600, 16
      %v692 = vrot.slane %v690, 1
      %v693 = vor.u32 %v688, %v692
      %v695 = vshll.u32 %v648, 16
      %v697 = vrot.slane %v695, 1
      %v698 = vsel %vm662, %v693, %v697
      %v700 = vshrl.u32 %v601, 16
      %v702 = vshll.u32 %v601, 16
      %v704 = vrot.slane %v702, 1
      %v705 = vor.u32 %v700, %v704
      %v707 = vshll.u32 %v649, 16
      %v709 = vrot.slane %v707, 1
      %v710 = vsel %vm662, %v705, %v709
      %v712 = vshrl.u32 %v602, 16
      %v714 = vshll.u32 %v602, 16
      %v716 = vrot.slane %v714, 1
      %v717 = vor.u32 %v712, %v716
      %v719 = vshll.u32 %v650, 16
      %v721 = vrot.slane %v719, 1
      %v722 = vsel %vm662, %v717, %v721
      %v724 = vshrl.u32 %v603, 16
      %v726 = vshll.u32 %v603, 16
      %v728 = vrot.slane %v726, 1
      %v729 = vor.u32 %v724, %v728
      %v731 = vshll.u32 %v651, 16
      %v733 = vrot.slane %v731, 1
      %v734 = vsel %vm662, %v729, %v733
      %v736 = vshrl.u32 %v604, 16
      %v738 = vshll.u32 %v604, 16
      %v740 = vrot.slane %v738, 1
      %v741 = vor.u32 %v736, %v740
      %v743 = vshll.u32 %v652, 16
      %v745 = vrot.slane %v743, 1
      %v746 = vsel %vm662, %v741, %v745
      %v748 = vshrl.u32 %v605, 16
      %v750 = vshll.u32 %v605, 16
      %v752 = vrot.slane %v750, 1
      %v753 = vor.u32 %v748, %v752
      %v755 = vshll.u32 %v653, 16
      %v757 = vrot.slane %v755, 1
      %v758 = vsel %vm662, %v753, %v757
      %v760 = vshrl.u32 %v606, 16
      %v762 = vshll.u32 %v606, 16
      %v764 = vrot.slane %v762, 1
      %v765 = vor.u32 %v760, %v764
      %v767 = vshll.u32 %v654, 16
      %v769 = vrot.slane %v767, 1
      %v770 = vsel %vm662, %v765, %v769
      %v772 = vshrl.u32 %v607, 16
      %v774 = vshll.u32 %v607, 16
      %v776 = vrot.slane %v774, 1
      %v777 = vor.u32 %v772, %v776
      %v779 = vshll.u32 %v655, 16
      %v781 = vrot.slane %v779, 1
      %v782 = vsel %vm662, %v777, %v781
      %v784 = vshrl.u32 %v608, 16
      %v786 = vshll.u32 %v608, 16
      %v788 = vrot.slane %v786, 1
      %v789 = vor.u32 %v784, %v788
      %v791 = vshll.u32 %v656, 16
      %v793 = vrot.slane %v791, 1
      %v794 = vsel %vm662, %v789, %v793
      %v796 = vshrl.u32 %v609, 16
      %v798 = vshll.u32 %v609, 16
      %v800 = vrot.slane %v798, 1
      %v801 = vor.u32 %v796, %v800
      %v803 = vshll.u32 %v657, 16
      %v805 = vrot.slane %v803, 1
      %v806 = vsel %vm662, %v801, %v805
      %v808 = vshrl.u32 %v610, 16
      %v810 = vshll.u32 %v610, 16
      %v812 = vrot.slane %v810, 1
      %v813 = vor.u32 %v808, %v812
      %v815 = vshll.u32 %v658, 16
      %v817 = vrot.slane %v815, 1
      %v818 = vsel %vm662, %v813, %v817
      %v820 = vshrl.u32 %v611, 16
      %v822 = vshll.u32 %v611, 16
      %v824 = vrot.slane %v822, 1
      %v825 = vor.u32 %v820, %v824
      %v827 = vshll.u32 %v659, 16
      %v829 = vrot.slane %v827, 1
      %v830 = vsel %vm662, %v825, %v829
      %v832 = vshrl.u32 %v612, 16
      %v834 = vshll.u32 %v612, 16
      %v836 = vrot.slane %v834, 1
      %v837 = vor.u32 %v832, %v836
      %v839 = vshll.u32 %v660, 16
      %v841 = vrot.slane %v839, 1
      %v842 = vsel %vm662, %v837, %v841
      %v844 = vshrl.u32 %v613, 16
      %v846 = vshll.u32 %v613, 16
      %v848 = vrot.slane %v846, 1
      %v849 = vor.u32 %v844, %v848
      %v851 = vshll.u32 %v661, 16
      %v853 = vrot.slane %v851, 1
      %v854 = vsel %vm662, %v849, %v853
      %855 = vrot.lane.b32.xlu0 %v674, 16
      %v856 = vpop.permute.xlu0 %855
      %857 = vrot.lane.b32.xlu0 %v686, 16
      %v858 = vpop.permute.xlu0 %857
      %859 = vrot.lane.b32.xlu0 %v698, 16
      %v860 = vpop.permute.xlu0 %859
      %861 = vrot.lane.b32.xlu0 %v710, 16
      %v862 = vpop.permute.xlu0 %861
      %863 = vrot.lane.b32.xlu0 %v722, 16
      %v864 = vpop.permute.xlu0 %863
      %865 = vrot.lane.b32.xlu0 %v734, 16
      %v866 = vpop.permute.xlu0 %865
      %867 = vrot.lane.b32.xlu0 %v746, 16
      %v868 = vpop.permute.xlu0 %867
      %869 = vrot.lane.b32.xlu0 %v758, 16
      %v870 = vpop.permute.xlu0 %869
      %871 = vrot.lane.b32.xlu0 %v770, 16
      %v872 = vpop.permute.xlu0 %871
      %873 = vrot.lane.b32.xlu0 %v782, 16
      %v874 = vpop.permute.xlu0 %873
      %875 = vrot.lane.b32.xlu0 %v794, 16
      %v876 = vpop.permute.xlu0 %875
      %877 = vrot.lane.b32.xlu0 %v806, 16
      %v878 = vpop.permute.xlu0 %877
      %879 = vrot.lane.b32.xlu0 %v818, 16
      %v880 = vpop.permute.xlu0 %879
      %881 = vrot.lane.b32.xlu0 %v830, 16
      %v882 = vpop.permute.xlu0 %881
      %883 = vrot.lane.b32.xlu0 %v842, 16
      %v884 = vpop.permute.xlu0 %883
      %885 = vrot.lane.b32.xlu0 %v854, 16
      %v886 = vpop.permute.xlu0 %885
      %vm887 = vcmask 1046528
      %v888 = vrot.slane %v598, 1
      %v889 = vrot.slane %v646, 1
      %v890 = vsel %vm887, %v888, %v889
      %v891 = vrot.slane %v599, 1
      %v892 = vrot.slane %v647, 1
      %v893 = vsel %vm887, %v891, %v892
      %v894 = vrot.slane %v600, 1
      %v895 = vrot.slane %v648, 1
      %v896 = vsel %vm887, %v894, %v895
      %v897 = vrot.slane %v601, 1
      %v898 = vrot.slane %v649, 1
      %v899 = vsel %vm887, %v897, %v898
      %v900 = vrot.slane %v602, 1
      %v901 = vrot.slane %v650, 1
      %v902 = vsel %vm887, %v900, %v901
      %v903 = vrot.slane %v603, 1
      %v904 = vrot.slane %v651, 1
      %v905 = vsel %vm887, %v903, %v904
      %v906 = vrot.slane %v604, 1
      %v907 = vrot.slane %v652, 1
      %v908 = vsel %vm887, %v906, %v907
      %v909 = vrot.slane %v605, 1
      %v910 = vrot.slane %v653, 1
      %v911 = vsel %vm887, %v909, %v910
      %v912 = vrot.slane %v606, 1
      %v913 = vrot.slane %v654, 1
      %v914 = vsel %vm887, %v912, %v913
      %v915 = vrot.slane %v607, 1
      %v916 = vrot.slane %v655, 1
      %v917 = vsel %vm887, %v915, %v916
      %v918 = vrot.slane %v608, 1
      %v919 = vrot.slane %v656, 1
      %v920 = vsel %vm887, %v918, %v919
      %v921 = vrot.slane %v609, 1
      %v922 = vrot.slane %v657, 1
      %v923 = vsel %vm887, %v921, %v922
      %v924 = vrot.slane %v610, 1
      %v925 = vrot.slane %v658, 1
      %v926 = vsel %vm887, %v924, %v925
      %v927 = vrot.slane %v611, 1
      %v928 = vrot.slane %v659, 1
      %v929 = vsel %vm887, %v927, %v928
      %v930 = vrot.slane %v612, 1
      %v931 = vrot.slane %v660, 1
      %v932 = vsel %vm887, %v930, %v931
      %v933 = vrot.slane %v613, 1
      %v934 = vrot.slane %v661, 1
      %v935 = vsel %vm887, %v933, %v934
      %936 = vrot.lane.b32.xlu0 %v890, 32
      %v937 = vpop.permute.xlu0 %936
      %938 = vrot.lane.b32.xlu0 %v893, 32
      %v939 = vpop.permute.xlu0 %938
      %940 = vrot.lane.b32.xlu0 %v896, 32
      %v941 = vpop.permute.xlu0 %940
      %942 = vrot.lane.b32.xlu0 %v899, 32
      %v943 = vpop.permute.xlu0 %942
      %944 = vrot.lane.b32.xlu0 %v902, 32
      %v945 = vpop.permute.xlu0 %944
      %946 = vrot.lane.b32.xlu0 %v905, 32
      %v947 = vpop.permute.xlu0 %946
      %948 = vrot.lane.b32.xlu0 %v908, 32
      %v949 = vpop.permute.xlu0 %948
      %950 = vrot.lane.b32.xlu0 %v911, 32
      %v951 = vpop.permute.xlu0 %950
      %952 = vrot.lane.b32.xlu0 %v914, 32
      %v953 = vpop.permute.xlu0 %952
      %954 = vrot.lane.b32.xlu0 %v917, 32
      %v955 = vpop.permute.xlu0 %954
      %956 = vrot.lane.b32.xlu0 %v920, 32
      %v957 = vpop.permute.xlu0 %956
      %958 = vrot.lane.b32.xlu0 %v923, 32
      %v959 = vpop.permute.xlu0 %958
      %960 = vrot.lane.b32.xlu0 %v926, 32
      %v961 = vpop.permute.xlu0 %960
      %962 = vrot.lane.b32.xlu0 %v929, 32
      %v963 = vpop.permute.xlu0 %962
      %964 = vrot.lane.b32.xlu0 %v932, 32
      %v965 = vpop.permute.xlu0 %964
      %966 = vrot.lane.b32.xlu0 %v935, 32
      %v967 = vpop.permute.xlu0 %966
      %vm968 = vcmask 130048
      %v970 = vsel %vm968, %v598, %v856
      %v972 = vsel %vm968, %v599, %v858
      %v974 = vsel %vm968, %v600, %v860
      %v976 = vsel %vm968, %v601, %v862
      %v978 = vsel %vm968, %v602, %v864
      %v980 = vsel %vm968, %v603, %v866
      %v982 = vsel %vm968, %v604, %v868
      %v984 = vsel %vm968, %v605, %v870
      %v986 = vsel %vm968, %v606, %v872
      %v988 = vsel %vm968, %v607, %v874
      %v990 = vsel %vm968, %v608, %v876
      %v992 = vsel %vm968, %v609, %v878
      %v994 = vsel %vm968, %v610, %v880
      %v996 = vsel %vm968, %v611, %v882
      %v998 = vsel %vm968, %v612, %v884
      %v1000 = vsel %vm968, %v613, %v886
      %vm1001 = vcmask 261120
      %v1003 = vsel %vm1001, %v970, %v937
      %v1006 = vsel %vm1001, %v972, %v939
      %v1009 = vsel %vm1001, %v974, %v941
      %v1012 = vsel %vm1001, %v976, %v943
      %v1015 = vsel %vm1001, %v978, %v945
      %v1018 = vsel %vm1001, %v980, %v947
      %v1021 = vsel %vm1001, %v982, %v949
      %v1024 = vsel %vm1001, %v984, %v951
      %v1027 = vsel %vm1001, %v986, %v953
      %v1030 = vsel %vm1001, %v988, %v955
      %v1033 = vsel %vm1001, %v990, %v957
      %v1036 = vsel %vm1001, %v992, %v959
      %v1039 = vsel %vm1001, %v994, %v961
      %v1042 = vsel %vm1001, %v996, %v963
      %v1045 = vsel %vm1001, %v998, %v965
      %v1048 = vsel %vm1001, %v1000, %v967
      %vm1050 = vcmask 392192
      %1051 = vst.msk [vmem:[#allocation2] sm:$0xff] %vm1050, %v1003
      %1052 = vst.msk [vmem:[#allocation2 + $0x8] sm:$0xff] %vm1050, %v1006
      %1053 = vst.msk [vmem:[#allocation2 + $0x10] sm:$0xff] %vm1050, %v1009
      %1054 = vst.msk [vmem:[#allocation2 + $0x18] sm:$0xff] %vm1050, %v1012
      %1055 = vst.msk [vmem:[#allocation2 + $0x20] sm:$0xff] %vm1050, %v1015
      %1056 = vst.msk [vmem:[#allocation2 + $0x28] sm:$0xff] %vm1050, %v1018
      %1057 = vst.msk [vmem:[#allocation2 + $0x30] sm:$0xff] %vm1050, %v1021
      %1058 = vst.msk [vmem:[#allocation2 + $0x38] sm:$0xff] %vm1050, %v1024
      %1059 = vst.msk [vmem:[#allocation2 + $0x40] sm:$0xff] %vm1050, %v1027
      %1060 = vst.msk [vmem:[#allocation2 + $0x48] sm:$0xff] %vm1050, %v1030
      %1061 = vst.msk [vmem:[#allocation2 + $0x50] sm:$0xff] %vm1050, %v1033
      %1062 = vst.msk [vmem:[#allocation2 + $0x58] sm:$0xff] %vm1050, %v1036
      %1063 = vst.msk [vmem:[#allocation2 + $0x60] sm:$0xff] %vm1050, %v1039
      %1064 = vst.msk [vmem:[#allocation2 + $0x68] sm:$0xff] %vm1050, %v1042
      %1065 = vst.msk [vmem:[#allocation2 + $0x70] sm:$0xff] %vm1050, %v1045
      %1066 = vst.msk [vmem:[#allocation2 + $0x78] sm:$0xff] %vm1050, %v1048
      %v1067 = vld [vmem:[%s429] sm:$0xf]
      %v1068 = vld [vmem:[%s429 + $0x4] sm:$0xf]
      %v1069 = vld [vmem:[%s429 + $0x8] sm:$0x1]
      %v1070 = vld [vmem:[%s429 + $0xc] sm:$0xf]
      %v1071 = vld [vmem:[%s429 + $0x10] sm:$0xf]
      %v1072 = vld [vmem:[%s429 + $0x14] sm:$0x1]
      %v1077 = vunpack.c.l.b16 %v1067
      %v1078 = vunpack.c.l.b16 %v1068
      %v1079 = vunpack.c.l.b16 %v1070
      %v1080 = vunpack.c.l.b16 %v1071
      %v1081 = vpack.c.b16 %v1078, %v1077
      %v1082 = vpack.c.b16 %v1080, %v1079
      %v1085 = vunpack.c.l.b16 %v1069
      %v1086 = vunpack.c.l.b16 %v1072
      %v1087 = vpack.c.b16 %v1085, %v1085
      %v1088 = vpack.c.b16 %v1086, %v1086
      %v1090 = vshrl.u32 %v1081, 16
      %v1092 = vshll.u32 %v1081, 16
      %v1094 = vrot.slane %v1092, 1
      %v1095 = vor.u32 %v1090, %v1094
      %v1097 = vshll.u32 %v1087, 16
      %v1099 = vrot.slane %v1097, 1
      %v1100 = vsel %vm662, %v1095, %v1099
      %v1102 = vshrl.u32 %v1082, 16
      %v1104 = vshll.u32 %v1082, 16
      %v1106 = vrot.slane %v1104, 1
      %v1107 = vor.u32 %v1102, %v1106
      %v1109 = vshll.u32 %v1088, 16
      %v1111 = vrot.slane %v1109, 1
      %v1112 = vsel %vm662, %v1107, %v1111
      %1113 = vrot.lane.b32.xlu0 %v1100, 16
      %v1114 = vpop.permute.xlu0 %1113
      %1115 = vrot.lane.b32.xlu0 %v1112, 16
      %v1116 = vpop.permute.xlu0 %1115
      %v1117 = vrot.slane %v1081, 1
      %v1118 = vrot.slane %v1087, 1
      %v1119 = vsel %vm887, %v1117, %v1118
      %v1120 = vrot.slane %v1082, 1
      %v1121 = vrot.slane %v1088, 1
      %v1122 = vsel %vm887, %v1120, %v1121
      %1123 = vrot.lane.b32.xlu0 %v1119, 32
      %v1124 = vpop.permute.xlu0 %1123
      %1125 = vrot.lane.b32.xlu0 %v1122, 32
      %v1126 = vpop.permute.xlu0 %1125
      %v1128 = vsel %vm968, %v1081, %v1114
      %v1130 = vsel %vm968, %v1082, %v1116
      %v1132 = vsel %vm1001, %v1128, %v1124
      %v1135 = vsel %vm1001, %v1130, %v1126
      %s1137 = scalar_lea.vmem [#allocation2], 128
      %1138 = vst.msk [vmem:[%s1137] sm:$0xff] %vm1050, %v1132
      %1139 = vst.msk [vmem:[%s1137 + $0x8] sm:$0xff] %vm1050, %v1135
      %v1140 = vld [vmem:[#allocation2] sm:$0xff]
      %v1141 = vld [vmem:[#allocation2 + $0x8] sm:$0xff]
      %v1142 = vld [vmem:[#allocation2 + $0x10] sm:$0xff]
      %v1143 = vld [vmem:[#allocation2 + $0x18] sm:$0xff]
      %v1144 = vld [vmem:[#allocation2 + $0x20] sm:$0xff]
      %v1145 = vld [vmem:[#allocation2 + $0x28] sm:$0xff]
      %v1146 = vld [vmem:[#allocation2 + $0x30] sm:$0xff]
      %v1147 = vld [vmem:[#allocation2 + $0x38] sm:$0xff]
      %v1148 = vld [vmem:[#allocation2 + $0x40] sm:$0xff]
      %v1149 = vld [vmem:[#allocation2 + $0x48] sm:$0xff]
      %v1150 = vld [vmem:[#allocation2 + $0x50] sm:$0xff]
      %v1151 = vld [vmem:[#allocation2 + $0x58] sm:$0xff]
      %v1152 = vld [vmem:[#allocation2 + $0x60] sm:$0xff]
      %v1153 = vld [vmem:[#allocation2 + $0x68] sm:$0xff]
      %v1154 = vld [vmem:[#allocation2 + $0x70] sm:$0xff]
      %v1155 = vld [vmem:[#allocation2 + $0x78] sm:$0xff]
      %v1156 = vld [vmem:[#allocation3] sm:$0xff]
      %v1157 = vld [vmem:[#allocation3 + $0x8] sm:$0xff]
      %v1158 = vld [vmem:[#allocation3 + $0x10] sm:$0xff]
      %v1159 = vld [vmem:[#allocation3 + $0x18] sm:$0xff]
      %v1160 = vld [vmem:[#allocation3 + $0x20] sm:$0xff]
      %v1161 = vld [vmem:[#allocation3 + $0x28] sm:$0xff]
      %v1162 = vld [vmem:[#allocation3 + $0x30] sm:$0xff]
      %v1163 = vld [vmem:[#allocation3 + $0x38] sm:$0xff]
      %v1164 = vld [vmem:[#allocation3 + $0x40] sm:$0xff]
      %v1165 = vld [vmem:[#allocation3 + $0x48] sm:$0xff]
      %v1166 = vld [vmem:[#allocation3 + $0x50] sm:$0xff]
      %v1167 = vld [vmem:[#allocation3 + $0x58] sm:$0xff]
      %v1168 = vld [vmem:[#allocation3 + $0x60] sm:$0xff]
      %v1169 = vld [vmem:[#allocation3 + $0x68] sm:$0xff]
      %v1170 = vld [vmem:[#allocation3 + $0x70] sm:$0xff]
      %v1171 = vld [vmem:[#allocation3 + $0x78] sm:$0xff]
      %v1172 = vld [vmem:[#allocation3 + $0x80] sm:$0xff]
      %v1173 = vld [vmem:[#allocation3 + $0x88] sm:$0xff]
      %v1174 = vld [vmem:[#allocation3 + $0x90] sm:$0xff]
      %v1175 = vld [vmem:[#allocation3 + $0x98] sm:$0xff]
      %v1176 = vld [vmem:[#allocation3 + $0xa0] sm:$0xff]
      %v1177 = vld [vmem:[#allocation3 + $0xa8] sm:$0xff]
      %v1178 = vld [vmem:[#allocation3 + $0xb0] sm:$0xff]
      %v1179 = vld [vmem:[#allocation3 + $0xb8] sm:$0xff]
      %v1180 = vld [vmem:[#allocation3 + $0xc0] sm:$0xff]
      %v1181 = vld [vmem:[#allocation3 + $0xc8] sm:$0xff]
      %v1182 = vld [vmem:[#allocation3 + $0xd0] sm:$0xff]
      %v1183 = vld [vmem:[#allocation3 + $0xd8] sm:$0xff]
      %v1184 = vld [vmem:[#allocation3 + $0xe0] sm:$0xff]
      %v1185 = vld [vmem:[#allocation3 + $0xe8] sm:$0xff]
      %v1186 = vld [vmem:[#allocation3 + $0xf0] sm:$0xff]
      %v1187 = vld [vmem:[#allocation3 + $0xf8] sm:$0xff]
      %v1188 = vld [vmem:[%s437] sm:$0xf]
      %v1189 = vld [vmem:[%s437 + $0x4] sm:$0xf]
      %v1190 = vld [vmem:[%s437 + $0x8] sm:$0xf]
      %v1191 = vld [vmem:[%s437 + $0xc] sm:$0xf]
      %v1192 = vld [vmem:[%s437 + $0x10] sm:$0xf]
      %v1193 = vld [vmem:[%s437 + $0x14] sm:$0xf]
      %v1200 = vunpack.c.l.b16 %v1188
      %v1201 = vunpack.c.l.b16 %v1189
      %v1202 = vunpack.c.l.b16 %v1190
      %v1203 = vunpack.c.l.b16 %v1191
      %v1204 = vunpack.c.l.b16 %v1192
      %v1205 = vunpack.c.l.b16 %v1193
      %v1206 = vpack.c.b16 %v1201, %v1200
      %v1207 = vpack.c.b16 %v1203, %v1202
      %v1208 = vpack.c.b16 %v1205, %v1204
      %v1213 = vsel %vm1050, %v1140, 0
      %v1216 = vsel %vm1050, %v1141, 0
      %v1219 = vsel %vm1050, %v1142, 0
      %v1222 = vsel %vm1050, %v1143, 0
      %v1225 = vsel %vm1050, %v1144, 0
      %v1228 = vsel %vm1050, %v1145, 0
      %v1231 = vsel %vm1050, %v1146, 0
      %v1234 = vsel %vm1050, %v1147, 0
      %v1237 = vsel %vm1050, %v1148, 0
      %v1240 = vsel %vm1050, %v1149, 0
      %v1243 = vsel %vm1050, %v1150, 0
      %v1246 = vsel %vm1050, %v1151, 0
      %v1249 = vsel %vm1050, %v1152, 0
      %v1252 = vsel %vm1050, %v1153, 0
      %v1255 = vsel %vm1050, %v1154, 0
      %v1258 = vsel %vm1050, %v1155, 0
      %1260 = vmatprep.subr.bf16.mxu0 0
      %1261 = vmatpush1.bf16.msra.mxu0 %v1206
      %1262 = vmatprep.subr.bf16.mxu0 0
      %1263 = vmatpush1.bf16.msra.mxu0 %v1207
      %1264 = vmatprep.subr.bf16.mxu0 0
      %1265 = vmatpush1.bf16.msra.mxu0 %v1208
      %1266 = vmatprep.subr.bf16.mxu0 0
      %1267 = vmatpush1.bf16.msra.mxu0 0
      %1268 = vmatprep.subr.bf16.mxu0 0
      %1269 = vmatpush1.bf16.msra.mxu0 0
      %1270 = vmatprep.subr.bf16.mxu0 0
      %1271 = vmatpush1.bf16.msra.mxu0 0
      %1272 = vmatprep.subr.bf16.mxu0 0
      %1273 = vmatpush1.bf16.msra.mxu0 0
      %1274 = vmatprep.subr.bf16.mxu0 0
      %1275 = vmatpush1.bf16.msra.mxu0 0
      %1276 = vmatprep.subr.bf16.mxu0 0
      %1277 = vmatpush1.bf16.msra.mxu0 0
      %1278 = vmatprep.subr.bf16.mxu0 0
      %1279 = vmatpush1.bf16.msra.mxu0 0
      %1280 = vmatprep.subr.bf16.mxu0 0
      %1281 = vmatpush1.bf16.msra.mxu0 0
      %1282 = vmatprep.subr.bf16.mxu0 0
      %1283 = vmatpush1.bf16.msra.mxu0 0
      %1284 = vmatprep.subr.bf16.mxu0 0
      %1285 = vmatpush1.bf16.msra.mxu0 0
      %1286 = vmatprep.subr.bf16.mxu0 0
      %1287 = vmatpush1.bf16.msra.mxu0 0
      %1288 = vmatprep.subr.bf16.mxu0 0
      %1289 = vmatpush1.bf16.msra.mxu0 0
      %1290 = vmatprep.subr.bf16.mxu0 0
      %1291 = vmatpush1.bf16.msra.mxu0 0
      %1292 = vmatprep.mubr.bf16.mxu0 0
      %1293 = vmatmul.mubr.bf16.gmra.mrb[0].mxu0 %v1213
      %v1294 = vpop.f32.mrb[0].mxu0
      %v1295 = vadd.f32 0.0, %v1294
      %v1296 = vpop.f32.mrb[0].mxu0
      %v1297 = vpop.f32.mrb[0].mxu0
      %v1298 = vadd.f32 0.0, %v1297
      %v1299 = vpop.f32.mrb[0].mxu0
      %1300 = vmatprep.mubr.bf16.mxu0 0
      %1301 = vmatmul.mubr.bf16.gmra.mrb[0].mxu0 %v1216
      %v1302 = vpop.f32.mrb[0].mxu0
      %v1303 = vadd.f32 0.0, %v1302
      %v1304 = vpop.f32.mrb[0].mxu0
      %v1305 = vpop.f32.mrb[0].mxu0
      %v1306 = vadd.f32 0.0, %v1305
      %v1307 = vpop.f32.mrb[0].mxu0
      %1308 = vmatprep.mubr.bf16.mxu0 0
      %1309 = vmatmul.mubr.bf16.gmra.mrb[0].mxu0 %v1219
      %v1310 = vpop.f32.mrb[0].mxu0
      %v1311 = vadd.f32 0.0, %v1310
      %v1312 = vpop.f32.mrb[0].mxu0
      %v1313 = vpop.f32.mrb[0].mxu0
      %v1314 = vadd.f32 0.0, %v1313
      %v1315 = vpop.f32.mrb[0].mxu0
      %1316 = vmatprep.mubr.bf16.mxu0 0
      %1317 = vmatmul.mubr.bf16.gmra.mrb[0].mxu0 %v1222
      %v1318 = vpop.f32.mrb[0].mxu0
      %v1319 = vadd.f32 0.0, %v1318
      %v1320 = vpop.f32.mrb[0].mxu0
      %v1321 = vpop.f32.mrb[0].mxu0
      %v1322 = vadd.f32 0.0, %v1321
      %v1323 = vpop.f32.mrb[0].mxu0
      %1324 = vmatprep.mubr.bf16.mxu0 0
      %1325 = vmatmul.mubr.bf16.gmra.mrb[0].mxu0 %v1225
      %v1326 = vpop.f32.mrb[0].mxu0
      %v1327 = vadd.f32 0.0, %v1326
      %v1328 = vpop.f32.mrb[0].mxu0
      %v1329 = vpop.f32.mrb[0].mxu0
      %v1330 = vadd.f32 0.0, %v1329
      %v1331 = vpop.f32.mrb[0].mxu0
      %1332 = vmatprep.mubr.bf16.mxu0 0
      %1333 = vmatmul.mubr.bf16.gmra.mrb[0].mxu0 %v1228
      %v1334 = vpop.f32.mrb[0].mxu0
      %v1335 = vadd.f32 0.0, %v1334
      %v1336 = vpop.f32.mrb[0].mxu0
      %v1337 = vpop.f32.mrb[0].mxu0
      %v1338 = vadd.f32 0.0, %v1337
      %v1339 = vpop.f32.mrb[0].mxu0
      %1340 = vmatprep.mubr.bf16.mxu0 0
      %1341 = vmatmul.mubr.bf16.gmra.mrb[0].mxu0 %v1231
      %v1342 = vpop.f32.mrb[0].mxu0
      %v1343 = vadd.f32 0.0, %v1342
      %v1344 = vpop.f32.mrb[0].mxu0
      %v1345 = vpop.f32.mrb[0].mxu0
      %v1346 = vadd.f32 0.0, %v1345
      %v1347 = vpop.f32.mrb[0].mxu0
      %1348 = vmatprep.mubr.bf16.mxu0 0
      %1349 = vmatmul.mubr.bf16.gmra.mrb[0].mxu0 %v1234
      %v1350 = vpop.f32.mrb[0].mxu0
      %v1351 = vadd.f32 0.0, %v1350
      %v1352 = vpop.f32.mrb[0].mxu0
      %v1353 = vpop.f32.mrb[0].mxu0
      %v1354 = vadd.f32 0.0, %v1353
      %v1355 = vpop.f32.mrb[0].mxu0
      %1356 = vmatprep.mubr.bf16.mxu0 0
      %1357 = vmatmul.mubr.bf16.gmra.mrb[0].mxu0 %v1237
      %v1358 = vpop.f32.mrb[0].mxu0
      %v1359 = vadd.f32 0.0, %v1358
      %v1360 = vpop.f32.mrb[0].mxu0
      %v1361 = vpop.f32.mrb[0].mxu0
      %v1362 = vadd.f32 0.0, %v1361
      %v1363 = vpop.f32.mrb[0].mxu0
      %1364 = vmatprep.mubr.bf16.mxu0 0
      %1365 = vmatmul.mubr.bf16.gmra.mrb[0].mxu0 %v1240
      %v1366 = vpop.f32.mrb[0].mxu0
      %v1367 = vadd.f32 0.0, %v1366
      %v1368 = vpop.f32.mrb[0].mxu0
      %v1369 = vpop.f32.mrb[0].mxu0
      %v1370 = vadd.f32 0.0, %v1369
      %v1371 = vpop.f32.mrb[0].mxu0
      %1372 = vmatprep.mubr.bf16.mxu0 0
      %1373 = vmatmul.mubr.bf16.gmra.mrb[0].mxu0 %v1243
      %v1374 = vpop.f32.mrb[0].mxu0
      %v1375 = vadd.f32 0.0, %v1374
      %v1376 = vpop.f32.mrb[0].mxu0
      %v1377 = vpop.f32.mrb[0].mxu0
      %v1378 = vadd.f32 0.0, %v1377
      %v1379 = vpop.f32.mrb[0].mxu0
      %1380 = vmatprep.mubr.bf16.mxu0 0
      %1381 = vmatmul.mubr.bf16.gmra.mrb[0].mxu0 %v1246
      %v1382 = vpop.f32.mrb[0].mxu0
      %v1383 = vadd.f32 0.0, %v1382
      %v1384 = vpop.f32.mrb[0].mxu0
      %v1385 = vpop.f32.mrb[0].mxu0
      %v1386 = vadd.f32 0.0, %v1385
      %v1387 = vpop.f32.mrb[0].mxu0
      %1388 = vmatprep.mubr.bf16.mxu0 0
      %1389 = vmatmul.mubr.bf16.gmra.mrb[0].mxu0 %v1249
      %v1390 = vpop.f32.mrb[0].mxu0
      %v1391 = vadd.f32 0.0, %v1390
      %v1392 = vpop.f32.mrb[0].mxu0
      %v1393 = vpop.f32.mrb[0].mxu0
      %v1394 = vadd.f32 0.0, %v1393
      %v1395 = vpop.f32.mrb[0].mxu0
      %1396 = vmatprep.mubr.bf16.mxu0 0
      %1397 = vmatmul.mubr.bf16.gmra.mrb[0].mxu0 %v1252
      %v1398 = vpop.f32.mrb[0].mxu0
      %v1399 = vadd.f32 0.0, %v1398
      %v1400 = vpop.f32.mrb[0].mxu0
      %v1401 = vpop.f32.mrb[0].mxu0
      %v1402 = vadd.f32 0.0, %v1401
      %v1403 = vpop.f32.mrb[0].mxu0
      %1404 = vmatprep.mubr.bf16.mxu0 0
      %1405 = vmatmul.mubr.bf16.gmra.mrb[0].mxu0 %v1255
      %v1406 = vpop.f32.mrb[0].mxu0
      %v1407 = vadd.f32 0.0, %v1406
      %v1408 = vpop.f32.mrb[0].mxu0
      %v1409 = vpop.f32.mrb[0].mxu0
      %v1410 = vadd.f32 0.0, %v1409
      %v1411 = vpop.f32.mrb[0].mxu0
      %1412 = vmatprep.mubr.bf16.mxu0 0
      %1413 = vmatmul.mubr.bf16.gmra.mrb[0].mxu0 %v1258
      %v1414 = vpop.f32.mrb[0].mxu0
      %v1415 = vadd.f32 0.0, %v1414
      %v1416 = vpop.f32.mrb[0].mxu0
      %v1417 = vpop.f32.mrb[0].mxu0
      %v1418 = vadd.f32 0.0, %v1417
      %v1419 = vpop.f32.mrb[0].mxu0
      %1420 = vdwg.mxu0
      %v1421 = vadd.f32 %v1156, %v1295
      %v1422 = vadd.f32 %v1157, %v1298
      %v1423 = vadd.f32 %v1158, %v1303
      %v1424 = vadd.f32 %v1159, %v1306
      %v1425 = vadd.f32 %v1160, %v1311
      %v1426 = vadd.f32 %v1161, %v1314
      %v1427 = vadd.f32 %v1162, %v1319
      %v1428 = vadd.f32 %v1163, %v1322
      %v1429 = vadd.f32 %v1164, %v1327
      %v1430 = vadd.f32 %v1165, %v1330
      %v1431 = vadd.f32 %v1166, %v1335
      %v1432 = vadd.f32 %v1167, %v1338
      %v1433 = vadd.f32 %v1168, %v1343
      %v1434 = vadd.f32 %v1169, %v1346
      %v1435 = vadd.f32 %v1170, %v1351
      %v1436 = vadd.f32 %v1171, %v1354
      %v1437 = vadd.f32 %v1172, %v1359
      %v1438 = vadd.f32 %v1173, %v1362
      %v1439 = vadd.f32 %v1174, %v1367
      %v1440 = vadd.f32 %v1175, %v1370
      %v1441 = vadd.f32 %v1176, %v1375
      %v1442 = vadd.f32 %v1177, %v1378
      %v1443 = vadd.f32 %v1178, %v1383
      %v1444 = vadd.f32 %v1179, %v1386
      %v1445 = vadd.f32 %v1180, %v1391
      %v1446 = vadd.f32 %v1181, %v1394
      %v1447 = vadd.f32 %v1182, %v1399
      %v1448 = vadd.f32 %v1183, %v1402
      %v1449 = vadd.f32 %v1184, %v1407
      %v1450 = vadd.f32 %v1185, %v1410
      %v1451 = vadd.f32 %v1186, %v1415
      %v1452 = vadd.f32 %v1187, %v1418
      %1453 = vst.msk [vmem:[#allocation3] sm:$0xff] %vm1001, %v1421
      %1454 = vst.msk [vmem:[#allocation3 + $0x8] sm:$0xff] %vm1001, %v1422
      %1455 = vst.msk [vmem:[#allocation3 + $0x10] sm:$0xff] %vm1001, %v1423
      %1456 = vst.msk [vmem:[#allocation3 + $0x18] sm:$0xff] %vm1001, %v1424
      %1457 = vst.msk [vmem:[#allocation3 + $0x20] sm:$0xff] %vm1001, %v1425
      %1458 = vst.msk [vmem:[#allocation3 + $0x28] sm:$0xff] %vm1001, %v1426
      %1459 = vst.msk [vmem:[#allocation3 + $0x30] sm:$0xff] %vm1001, %v1427
      %1460 = vst.msk [vmem:[#allocation3 + $0x38] sm:$0xff] %vm1001, %v1428
      %1461 = vst.msk [vmem:[#allocation3 + $0x40] sm:$0xff] %vm1001, %v1429
      %1462 = vst.msk [vmem:[#allocation3 + $0x48] sm:$0xff] %vm1001, %v1430
      %1463 = vst.msk [vmem:[#allocation3 + $0x50] sm:$0xff] %vm1001, %v1431
      %1464 = vst.msk [vmem:[#allocation3 + $0x58] sm:$0xff] %vm1001, %v1432
      %1465 = vst.msk [vmem:[#allocation3 + $0x60] sm:$0xff] %vm1001, %v1433
      %1466 = vst.msk [vmem:[#allocation3 + $0x68] sm:$0xff] %vm1001, %v1434
      %1467 = vst.msk [vmem:[#allocation3 + $0x70] sm:$0xff] %vm1001, %v1435
      %1468 = vst.msk [vmem:[#allocation3 + $0x78] sm:$0xff] %vm1001, %v1436
      %1469 = vst.msk [vmem:[#allocation3 + $0x80] sm:$0xff] %vm1001, %v1437
      %1470 = vst.msk [vmem:[#allocation3 + $0x88] sm:$0xff] %vm1001, %v1438
      %1471 = vst.msk [vmem:[#allocation3 + $0x90] sm:$0xff] %vm1001, %v1439
      %1472 = vst.msk [vmem:[#allocation3 + $0x98] sm:$0xff] %vm1001, %v1440
      %1473 = vst.msk [vmem:[#allocation3 + $0xa0] sm:$0xff] %vm1001, %v1441
      %1474 = vst.msk [vmem:[#allocation3 + $0xa8] sm:$0xff] %vm1001, %v1442
      %1475 = vst.msk [vmem:[#allocation3 + $0xb0] sm:$0xff] %vm1001, %v1443
      %1476 = vst.msk [vmem:[#allocation3 + $0xb8] sm:$0xff] %vm1001, %v1444
      %1477 = vst.msk [vmem:[#allocation3 + $0xc0] sm:$0xff] %vm1001, %v1445
      %1478 = vst.msk [vmem:[#allocation3 + $0xc8] sm:$0xff] %vm1001, %v1446
      %1479 = vst.msk [vmem:[#allocation3 + $0xd0] sm:$0xff] %vm1001, %v1447
      %1480 = vst.msk [vmem:[#allocation3 + $0xd8] sm:$0xff] %vm1001, %v1448
      %1481 = vst.msk [vmem:[#allocation3 + $0xe0] sm:$0xff] %vm1001, %v1449
      %1482 = vst.msk [vmem:[#allocation3 + $0xe8] sm:$0xff] %vm1001, %v1450
      %1483 = vst.msk [vmem:[#allocation3 + $0xf0] sm:$0xff] %vm1001, %v1451
      %1484 = vst.msk [vmem:[#allocation3 + $0xf8] sm:$0xff] %vm1001, %v1452
      %s1485 = scalar_lea.vmem [#allocation2], 8
      %v1486 = vld [vmem:[%s1485] sm:$0xff]
      %v1487 = vld [vmem:[%s1485 + $0x8] sm:$0xff]
      %v1488 = vld [vmem:[%s1485 + $0x10] sm:$0xff]
      %v1489 = vld [vmem:[%s1485 + $0x18] sm:$0xff]
      %v1490 = vld [vmem:[%s1485 + $0x20] sm:$0xff]
      %v1491 = vld [vmem:[%s1485 + $0x28] sm:$0xff]
      %v1492 = vld [vmem:[%s1485 + $0x30] sm:$0xff]
      %v1493 = vld [vmem:[%s1485 + $0x38] sm:$0xff]
      %v1494 = vld [vmem:[%s1485 + $0x40] sm:$0xff]
      %v1495 = vld [vmem:[%s1485 + $0x48] sm:$0xff]
      %v1496 = vld [vmem:[%s1485 + $0x50] sm:$0xff]
      %v1497 = vld [vmem:[%s1485 + $0x58] sm:$0xff]
      %v1498 = vld [vmem:[%s1485 + $0x60] sm:$0xff]
      %v1499 = vld [vmem:[%s1485 + $0x68] sm:$0xff]
      %v1500 = vld [vmem:[%s1485 + $0x70] sm:$0xff]
      %v1501 = vld [vmem:[%s1485 + $0x78] sm:$0xff]
      %v1502 = vld [vmem:[#allocation3] sm:$0xff]
      %v1503 = vld [vmem:[#allocation3 + $0x8] sm:$0xff]
      %v1504 = vld [vmem:[#allocation3 + $0x10] sm:$0xff]
      %v1505 = vld [vmem:[#allocation3 + $0x18] sm:$0xff]
      %v1506 = vld [vmem:[#allocation3 + $0x20] sm:$0xff]
      %v1507 = vld [vmem:[#allocation3 + $0x28] sm:$0xff]
      %v1508 = vld [vmem:[#allocation3 + $0x30] sm:$0xff]
      %v1509 = vld [vmem:[#allocation3 + $0x38] sm:$0xff]
      %v1510 = vld [vmem:[#allocation3 + $0x40] sm:$0xff]
      %v1511 = vld [vmem:[#allocation3 + $0x48] sm:$0xff]
      %v1512 = vld [vmem:[#allocation3 + $0x50] sm:$0xff]
      %v1513 = vld [vmem:[#allocation3 + $0x58] sm:$0xff]
      %v1514 = vld [vmem:[#allocation3 + $0x60] sm:$0xff]
      %v1515 = vld [vmem:[#allocation3 + $0x68] sm:$0xff]
      %v1516 = vld [vmem:[#allocation3 + $0x70] sm:$0xff]
      %v1517 = vld [vmem:[#allocation3 + $0x78] sm:$0xff]
      %v1518 = vld [vmem:[#allocation3 + $0x80] sm:$0xff]
      %v1519 = vld [vmem:[#allocation3 + $0x88] sm:$0xff]
      %v1520 = vld [vmem:[#allocation3 + $0x90] sm:$0xff]
      %v1521 = vld [vmem:[#allocation3 + $0x98] sm:$0xff]
      %v1522 = vld [vmem:[#allocation3 + $0xa0] sm:$0xff]
      %v1523 = vld [vmem:[#allocation3 + $0xa8] sm:$0xff]
      %v1524 = vld [vmem:[#allocation3 + $0xb0] sm:$0xff]
      %v1525 = vld [vmem:[#allocation3 + $0xb8] sm:$0xff]
      %v1526 = vld [vmem:[#allocation3 + $0xc0] sm:$0xff]
      %v1527 = vld [vmem:[#allocation3 + $0xc8] sm:$0xff]
      %v1528 = vld [vmem:[#allocation3 + $0xd0] sm:$0xff]
      %v1529 = vld [vmem:[#allocation3 + $0xd8] sm:$0xff]
      %v1530 = vld [vmem:[#allocation3 + $0xe0] sm:$0xff]
      %v1531 = vld [vmem:[#allocation3 + $0xe8] sm:$0xff]
      %v1532 = vld [vmem:[#allocation3 + $0xf0] sm:$0xff]
      %v1533 = vld [vmem:[#allocation3 + $0xf8] sm:$0xff]
      %s1534 = scalar_lea.vmem %s437, 24
      %v1535 = vld [vmem:[%s1534] sm:$0xf]
      %v1536 = vld [vmem:[%s1534 + $0x4] sm:$0xf]
      %v1537 = vld [vmem:[%s1534 + $0x8] sm:$0xf]
      %v1538 = vld [vmem:[%s1534 + $0xc] sm:$0xf]
      %v1539 = vld [vmem:[%s1534 + $0x10] sm:$0xf]
      %v1540 = vld [vmem:[%s1534 + $0x14] sm:$0xf]
      %v1547 = vunpack.c.l.b16 %v1535
      %v1548 = vunpack.c.l.b16 %v1536
      %v1549 = vunpack.c.l.b16 %v1537
      %v1550 = vunpack.c.l.b16 %v1538
      %v1551 = vunpack.c.l.b16 %v1539
      %v1552 = vunpack.c.l.b16 %v1540
      %v1553 = vpack.c.b16 %v1548, %v1547
      %v1554 = vpack.c.b16 %v1550, %v1549
      %v1555 = vpack.c.b16 %v1552, %v1551
      %v1560 = vsel %vm1050, %v1486, 0
      %v1563 = vsel %vm1050, %v1487, 0
      %v1566 = vsel %vm1050, %v1488, 0
      %v1569 = vsel %vm1050, %v1489, 0
      %v1572 = vsel %vm1050, %v1490, 0
      %v1575 = vsel %vm1050, %v1491, 0
      %v1578 = vsel %vm1050, %v1492, 0
      %v1581 = vsel %vm1050, %v1493, 0
      %v1584 = vsel %vm1050, %v1494, 0
      %v1587 = vsel %vm1050, %v1495, 0
      %v1590 = vsel %vm1050, %v1496, 0
      %v1593 = vsel %vm1050, %v1497, 0
      %v1596 = vsel %vm1050, %v1498, 0
      %v1599 = vsel %vm1050, %v1499, 0
      %v1602 = vsel %vm1050, %v1500, 0
      %v1605 = vsel %vm1050, %v1501, 0
      %1607 = vmatprep.subr.bf16.mxu0 0
      %1608 = vmatpush1.bf16.msra.mxu0 %v1553
      %1609 = vmatprep.subr.bf16.mxu0 0
      %1610 = vmatpush1.bf16.msra.mxu0 %v1554
      %1611 = vmatprep.subr.bf16.mxu0 0
      %1612 = vmatpush1.bf16.msra.mxu0 %v1555
      %1613 = vmatprep.subr.bf16.mxu0 0
      %1614 = vmatpush1.bf16.msra.mxu0 0
      %1615 = vmatprep.subr.bf16.mxu0 0
      %1616 = vmatpush1.bf16.msra.mxu0 0
      %1617 = vmatprep.subr.bf16.mxu0 0
      %1618 = vmatpush1.bf16.msra.mxu0 0
      %1619 = vmatprep.subr.bf16.mxu0 0
      %1620 = vmatpush1.bf16.msra.mxu0 0
      %1621 = vmatprep.subr.bf16.mxu0 0
      %1622 = vmatpush1.bf16.msra.mxu0 0
      %1623 = vmatprep.subr.bf16.mxu0 0
      %1624 = vmatpush1.bf16.msra.mxu0 0
      %1625 = vmatprep.subr.bf16.mxu0 0
      %1626 = vmatpush1.bf16.msra.mxu0 0
      %1627 = vmatprep.subr.bf16.mxu0 0
      %1628 = vmatpush1.bf16.msra.mxu0 0
      %1629 = vmatprep.subr.bf16.mxu0 0
      %1630 = vmatpush1.bf16.msra.mxu0 0
      %1631 = vmatprep.subr.bf16.mxu0 0
      %1632 = vmatpush1.bf16.msra.mxu0 0
      %1633 = vmatprep.subr.bf16.mxu0 0
      %1634 = vmatpush1.bf16.msra.mxu0 0
      %1635 = vmatprep.subr.bf16.mxu0 0
      %1636 = vmatpush1.bf16.msra.mxu0 0
      %1637 = vmatprep.subr.bf16.mxu0 0
      %1638 = vmatpush1.bf16.msra.mxu0 0
      %1639 = vmatprep.mubr.bf16.mxu0 0
      %1640 = vmatmul.mubr.bf16.gmra.mrb[0].mxu0 %v1560
      %v1641 = vpop.f32.mrb[0].mxu0
      %v1642 = vadd.f32 0.0, %v1641
      %v1643 = vpop.f32.mrb[0].mxu0
      %v1644 = vpop.f32.mrb[0].mxu0
      %v1645 = vadd.f32 0.0, %v1644
      %v1646 = vpop.f32.mrb[0].mxu0
      %1647 = vmatprep.mubr.bf16.mxu0 0
      %1648 = vmatmul.mubr.bf16.gmra.mrb[0].mxu0 %v1563
      %v1649 = vpop.f32.mrb[0].mxu0
      %v1650 = vadd.f32 0.0, %v1649
      %v1651 = vpop.f32.mrb[0].mxu0
      %v1652 = vpop.f32.mrb[0].mxu0
      %v1653 = vadd.f32 0.0, %v1652
      %v1654 = vpop.f32.mrb[0].mxu0
      %1655 = vmatprep.mubr.bf16.mxu0 0
      %1656 = vmatmul.mubr.bf16.gmra.mrb[0].mxu0 %v1566
      %v1657 = vpop.f32.mrb[0].mxu0
      %v1658 = vadd.f32 0.0, %v1657
      %v1659 = vpop.f32.mrb[0].mxu0
      %v1660 = vpop.f32.mrb[0].mxu0
      %v1661 = vadd.f32 0.0, %v1660
      %v1662 = vpop.f32.mrb[0].mxu0
      %1663 = vmatprep.mubr.bf16.mxu0 0
      %1664 = vmatmul.mubr.bf16.gmra.mrb[0].mxu0 %v1569
      %v1665 = vpop.f32.mrb[0].mxu0
      %v1666 = vadd.f32 0.0, %v1665
      %v1667 = vpop.f32.mrb[0].mxu0
      %v1668 = vpop.f32.mrb[0].mxu0
      %v1669 = vadd.f32 0.0, %v1668
      %v1670 = vpop.f32.mrb[0].mxu0
      %1671 = vmatprep.mubr.bf16.mxu0 0
      %1672 = vmatmul.mubr.bf16.gmra.mrb[0].mxu0 %v1572
      %v1673 = vpop.f32.mrb[0].mxu0
      %v1674 = vadd.f32 0.0, %v1673
      %v1675 = vpop.f32.mrb[0].mxu0
      %v1676 = vpop.f32.mrb[0].mxu0
      %v1677 = vadd.f32 0.0, %v1676
      %v1678 = vpop.f32.mrb[0].mxu0
      %1679 = vmatprep.mubr.bf16.mxu0 0
      %1680 = vmatmul.mubr.bf16.gmra.mrb[0].mxu0 %v1575
      %v1681 = vpop.f32.mrb[0].mxu0
      %v1682 = vadd.f32 0.0, %v1681
      %v1683 = vpop.f32.mrb[0].mxu0
      %v1684 = vpop.f32.mrb[0].mxu0
      %v1685 = vadd.f32 0.0, %v1684
      %v1686 = vpop.f32.mrb[0].mxu0
      %1687 = vmatprep.mubr.bf16.mxu0 0
      %1688 = vmatmul.mubr.bf16.gmra.mrb[0].mxu0 %v1578
      %v1689 = vpop.f32.mrb[0].mxu0
      %v1690 = vadd.f32 0.0, %v1689
      %v1691 = vpop.f32.mrb[0].mxu0
      %v1692 = vpop.f32.mrb[0].mxu0
      %v1693 = vadd.f32 0.0, %v1692
      %v1694 = vpop.f32.mrb[0].mxu0
      %1695 = vmatprep.mubr.bf16.mxu0 0
      %1696 = vmatmul.mubr.bf16.gmra.mrb[0].mxu0 %v1581
      %v1697 = vpop.f32.mrb[0].mxu0
      %v1698 = vadd.f32 0.0, %v1697
      %v1699 = vpop.f32.mrb[0].mxu0
      %v1700 = vpop.f32.mrb[0].mxu0
      %v1701 = vadd.f32 0.0, %v1700
      %v1702 = vpop.f32.mrb[0].mxu0
      %1703 = vmatprep.mubr.bf16.mxu0 0
      %1704 = vmatmul.mubr.bf16.gmra.mrb[0].mxu0 %v1584
      %v1705 = vpop.f32.mrb[0].mxu0
      %v1706 = vadd.f32 0.0, %v1705
      %v1707 = vpop.f32.mrb[0].mxu0
      %v1708 = vpop.f32.mrb[0].mxu0
      %v1709 = vadd.f32 0.0, %v1708
      %v1710 = vpop.f32.mrb[0].mxu0
      %1711 = vmatprep.mubr.bf16.mxu0 0
      %1712 = vmatmul.mubr.bf16.gmra.mrb[0].mxu0 %v1587
      %v1713 = vpop.f32.mrb[0].mxu0
      %v1714 = vadd.f32 0.0, %v1713
      %v1715 = vpop.f32.mrb[0].mxu0
      %v1716 = vpop.f32.mrb[0].mxu0
      %v1717 = vadd.f32 0.0, %v1716
      %v1718 = vpop.f32.mrb[0].mxu0
      %1719 = vmatprep.mubr.bf16.mxu0 0
      %1720 = vmatmul.mubr.bf16.gmra.mrb[0].mxu0 %v1590
      %v1721 = vpop.f32.mrb[0].mxu0
      %v1722 = vadd.f32 0.0, %v1721
      %v1723 = vpop.f32.mrb[0].mxu0
      %v1724 = vpop.f32.mrb[0].mxu0
      %v1725 = vadd.f32 0.0, %v1724
      %v1726 = vpop.f32.mrb[0].mxu0
      %1727 = vmatprep.mubr.bf16.mxu0 0
      %1728 = vmatmul.mubr.bf16.gmra.mrb[0].mxu0 %v1593
      %v1729 = vpop.f32.mrb[0].mxu0
      %v1730 = vadd.f32 0.0, %v1729
      %v1731 = vpop.f32.mrb[0].mxu0
      %v1732 = vpop.f32.mrb[0].mxu0
      %v1733 = vadd.f32 0.0, %v1732
      %v1734 = vpop.f32.mrb[0].mxu0
      %1735 = vmatprep.mubr.bf16.mxu0 0
      %1736 = vmatmul.mubr.bf16.gmra.mrb[0].mxu0 %v1596
      %v1737 = vpop.f32.mrb[0].mxu0
      %v1738 = vadd.f32 0.0, %v1737
      %v1739 = vpop.f32.mrb[0].mxu0
      %v1740 = vpop.f32.mrb[0].mxu0
      %v1741 = vadd.f32 0.0, %v1740
      %v1742 = vpop.f32.mrb[0].mxu0
      %1743 = vmatprep.mubr.bf16.mxu0 0
      %1744 = vmatmul.mubr.bf16.gmra.mrb[0].mxu0 %v1599
      %v1745 = vpop.f32.mrb[0].mxu0
      %v1746 = vadd.f32 0.0, %v1745
      %v1747 = vpop.f32.mrb[0].mxu0
      %v1748 = vpop.f32.mrb[0].mxu0
      %v1749 = vadd.f32 0.0, %v1748
      %v1750 = vpop.f32.mrb[0].mxu0
      %1751 = vmatprep.mubr.bf16.mxu0 0
      %1752 = vmatmul.mubr.bf16.gmra.mrb[0].mxu0 %v1602
      %v1753 = vpop.f32.mrb[0].mxu0
      %v1754 = vadd.f32 0.0, %v1753
      %v1755 = vpop.f32.mrb[0].mxu0
      %v1756 = vpop.f32.mrb[0].mxu0
      %v1757 = vadd.f32 0.0, %v1756
      %v1758 = vpop.f32.mrb[0].mxu0
      %1759 = vmatprep.mubr.bf16.mxu0 0
      %1760 = vmatmul.mubr.bf16.gmra.mrb[0].mxu0 %v1605
      %v1761 = vpop.f32.mrb[0].mxu0
      %v1762 = vadd.f32 0.0, %v1761
      %v1763 = vpop.f32.mrb[0].mxu0
      %v1764 = vpop.f32.mrb[0].mxu0
      %v1765 = vadd.f32 0.0, %v1764
      %v1766 = vpop.f32.mrb[0].mxu0
      %1767 = vdwg.mxu0
      %v1768 = vadd.f32 %v1502, %v1642
      %v1769 = vadd.f32 %v1503, %v1645
      %v1770 = vadd.f32 %v1504, %v1650
      %v1771 = vadd.f32 %v1505, %v1653
      %v1772 = vadd.f32 %v1506, %v1658
      %v1773 = vadd.f32 %v1507, %v1661
      %v1774 = vadd.f32 %v1508, %v1666
      %v1775 = vadd.f32 %v1509, %v1669
      %v1776 = vadd.f32 %v1510, %v1674
      %v1777 = vadd.f32 %v1511, %v1677
      %v1778 = vadd.f32 %v1512, %v1682
      %v1779 = vadd.f32 %v1513, %v1685
      %v1780 = vadd.f32 %v1514, %v1690
      %v1781 = vadd.f32 %v1515, %v1693
      %v1782 = vadd.f32 %v1516, %v1698
      %v1783 = vadd.f32 %v1517, %v1701
      %v1784 = vadd.f32 %v1518, %v1706
      %v1785 = vadd.f32 %v1519, %v1709
      %v1786 = vadd.f32 %v1520, %v1714
      %v1787 = vadd.f32 %v1521, %v1717
      %v1788 = vadd.f32 %v1522, %v1722
      %v1789 = vadd.f32 %v1523, %v1725
      %v1790 = vadd.f32 %v1524, %v1730
      %v1791 = vadd.f32 %v1525, %v1733
      %v1792 = vadd.f32 %v1526, %v1738
      %v1793 = vadd.f32 %v1527, %v1741
      %v1794 = vadd.f32 %v1528, %v1746
      %v1795 = vadd.f32 %v1529, %v1749
      %v1796 = vadd.f32 %v1530, %v1754
      %v1797 = vadd.f32 %v1531, %v1757
      %v1798 = vadd.f32 %v1532, %v1762
      %v1799 = vadd.f32 %v1533, %v1765
      %1800 = vst.msk [vmem:[#allocation3] sm:$0xff] %vm1001, %v1768
      %1801 = vst.msk [vmem:[#allocation3 + $0x8] sm:$0xff] %vm1001, %v1769
      %1802 = vst.msk [vmem:[#allocation3 + $0x10] sm:$0xff] %vm1001, %v1770
      %1803 = vst.msk [vmem:[#allocation3 + $0x18] sm:$0xff] %vm1001, %v1771
      %1804 = vst.msk [vmem:[#allocation3 + $0x20] sm:$0xff] %vm1001, %v1772
      %1805 = vst.msk [vmem:[#allocation3 + $0x28] sm:$0xff] %vm1001, %v1773
      %1806 = vst.msk [vmem:[#allocation3 + $0x30] sm:$0xff] %vm1001, %v1774
      %1807 = vst.msk [vmem:[#allocation3 + $0x38] sm:$0xff] %vm1001, %v1775
      %1808 = vst.msk [vmem:[#allocation3 + $0x40] sm:$0xff] %vm1001, %v1776
      %1809 = vst.msk [vmem:[#allocation3 + $0x48] sm:$0xff] %vm1001, %v1777
      %1810 = vst.msk [vmem:[#allocation3 + $0x50] sm:$0xff] %vm1001, %v1778
      %1811 = vst.msk [vmem:[#allocation3 + $0x58] sm:$0xff] %vm1001, %v1779
      %1812 = vst.msk [vmem:[#allocation3 + $0x60] sm:$0xff] %vm1001, %v1780
      %1813 = vst.msk [vmem:[#allocation3 + $0x68] sm:$0xff] %vm1001, %v1781
      %1814 = vst.msk [vmem:[#allocation3 + $0x70] sm:$0xff] %vm1001, %v1782
      %1815 = vst.msk [vmem:[#allocation3 + $0x78] sm:$0xff] %vm1001, %v1783
      %1816 = vst.msk [vmem:[#allocation3 + $0x80] sm:$0xff] %vm1001, %v1784
      %1817 = vst.msk [vmem:[#allocation3 + $0x88] sm:$0xff] %vm1001, %v1785
      %1818 = vst.msk [vmem:[#allocation3 + $0x90] sm:$0xff] %vm1001, %v1786
      %1819 = vst.msk [vmem:[#allocation3 + $0x98] sm:$0xff] %vm1001, %v1787
      %1820 = vst.msk [vmem:[#allocation3 + $0xa0] sm:$0xff] %vm1001, %v1788
      %1821 = vst.msk [vmem:[#allocation3 + $0xa8] sm:$0xff] %vm1001, %v1789
      %1822 = vst.msk [vmem:[#allocation3 + $0xb0] sm:$0xff] %vm1001, %v1790
      %1823 = vst.msk [vmem:[#allocation3 + $0xb8] sm:$0xff] %vm1001, %v1791
      %1824 = vst.msk [vmem:[#allocation3 + $0xc0] sm:$0xff] %vm1001, %v1792
      %1825 = vst.msk [vmem:[#allocation3 + $0xc8] sm:$0xff] %vm1001, %v1793
      %1826 = vst.msk [vmem:[#allocation3 + $0xd0] sm:$0xff] %vm1001, %v1794
      %1827 = vst.msk [vmem:[#allocation3 + $0xd8] sm:$0xff] %vm1001, %v1795
      %1828 = vst.msk [vmem:[#allocation3 + $0xe0] sm:$0xff] %vm1001, %v1796
      %1829 = vst.msk [vmem:[#allocation3 + $0xe8] sm:$0xff] %vm1001, %v1797
      %1830 = vst.msk [vmem:[#allocation3 + $0xf0] sm:$0xff] %vm1001, %v1798
      %1831 = vst.msk [vmem:[#allocation3 + $0xf8] sm:$0xff] %vm1001, %v1799
      %s1832 = scalar_lea.vmem [#allocation2], 16
      %v1833 = vld [vmem:[%s1832] sm:$0xff]
      %v1834 = vld [vmem:[%s1832 + $0x8] sm:$0xff]
      %v1835 = vld [vmem:[%s1832 + $0x10] sm:$0xff]
      %v1836 = vld [vmem:[%s1832 + $0x18] sm:$0xff]
      %v1837 = vld [vmem:[%s1832 + $0x20] sm:$0xff]
      %v1838 = vld [vmem:[%s1832 + $0x28] sm:$0xff]
      %v1839 = vld [vmem:[%s1832 + $0x30] sm:$0xff]
      %v1840 = vld [vmem:[%s1832 + $0x38] sm:$0xff]
      %v1841 = vld [vmem:[%s1832 + $0x40] sm:$0xff]
      %v1842 = vld [vmem:[%s1832 + $0x48] sm:$0xff]
      %v1843 = vld [vmem:[%s1832 + $0x50] sm:$0xff]
      %v1844 = vld [vmem:[%s1832 + $0x58] sm:$0xff]
      %v1845 = vld [vmem:[%s1832 + $0x60] sm:$0xff]
      %v1846 = vld [vmem:[%s1832 + $0x68] sm:$0xff]
      %v1847 = vld [vmem:[%s1832 + $0x70] sm:$0xff]
      %v1848 = vld [vmem:[%s1832 + $0x78] sm:$0xff]
      %v1849 = vld [vmem:[#allocation3] sm:$0xff]
      %v1850 = vld [vmem:[#allocation3 + $0x8] sm:$0xff]
      %v1851 = vld [vmem:[#allocation3 + $0x10] sm:$0xff]
      %v1852 = vld [vmem:[#allocation3 + $0x18] sm:$0xff]
      %v1853 = vld [vmem:[#allocation3 + $0x20] sm:$0xff]
      %v1854 = vld [vmem:[#allocation3 + $0x28] sm:$0xff]
      %v1855 = vld [vmem:[#allocation3 + $0x30] sm:$0xff]
      %v1856 = vld [vmem:[#allocation3 + $0x38] sm:$0xff]
      %v1857 = vld [vmem:[#allocation3 + $0x40] sm:$0xff]
      %v1858 = vld [vmem:[#allocation3 + $0x48] sm:$0xff]
      %v1859 = vld [vmem:[#allocation3 + $0x50] sm:$0xff]
      %v1860 = vld [vmem:[#allocation3 + $0x58] sm:$0xff]
      %v1861 = vld [vmem:[#allocation3 + $0x60] sm:$0xff]
      %v1862 = vld [vmem:[#allocation3 + $0x68] sm:$0xff]
      %v1863 = vld [vmem:[#allocation3 + $0x70] sm:$0xff]
      %v1864 = vld [vmem:[#allocation3 + $0x78] sm:$0xff]
      %v1865 = vld [vmem:[#allocation3 + $0x80] sm:$0xff]
      %v1866 = vld [vmem:[#allocation3 + $0x88] sm:$0xff]
      %v1867 = vld [vmem:[#allocation3 + $0x90] sm:$0xff]
      %v1868 = vld [vmem:[#allocation3 + $0x98] sm:$0xff]
      %v1869 = vld [vmem:[#allocation3 + $0xa0] sm:$0xff]
      %v1870 = vld [vmem:[#allocation3 + $0xa8] sm:$0xff]
      %v1871 = vld [vmem:[#allocation3 + $0xb0] sm:$0xff]
      %v1872 = vld [vmem:[#allocation3 + $0xb8] sm:$0xff]
      %v1873 = vld [vmem:[#allocation3 + $0xc0] sm:$0xff]
      %v1874 = vld [vmem:[#allocation3 + $0xc8] sm:$0xff]
      %v1875 = vld [vmem:[#allocation3 + $0xd0] sm:$0xff]
      %v1876 = vld [vmem:[#allocation3 + $0xd8] sm:$0xff]
      %v1877 = vld [vmem:[#allocation3 + $0xe0] sm:$0xff]
      %v1878 = vld [vmem:[#allocation3 + $0xe8] sm:$0xff]
      %v1879 = vld [vmem:[#allocation3 + $0xf0] sm:$0xff]
      %v1880 = vld [vmem:[#allocation3 + $0xf8] sm:$0xff]
      %s1881 = scalar_lea.vmem %s437, 48
      %v1882 = vld [vmem:[%s1881] sm:$0xf]
      %v1883 = vld [vmem:[%s1881 + $0x4] sm:$0xf]
      %v1884 = vld [vmem:[%s1881 + $0x8] sm:$0xf]
      %v1885 = vld [vmem:[%s1881 + $0xc] sm:$0xf]
      %v1886 = vld [vmem:[%s1881 + $0x10] sm:$0xf]
      %v1887 = vld [vmem:[%s1881 + $0x14] sm:$0xf]
      %v1894 = vunpack.c.l.b16 %v1882
      %v1895 = vunpack.c.l.b16 %v1883
      %v1896 = vunpack.c.l.b16 %v1884
      %v1897 = vunpack.c.l.b16 %v1885
      %v1898 = vunpack.c.l.b16 %v1886
      %v1899 = vunpack.c.l.b16 %v1887
      %v1900 = vpack.c.b16 %v1895, %v1894
      %v1901 = vpack.c.b16 %v1897, %v1896
      %v1902 = vpack.c.b16 %v1899, %v1898
      %v1907 = vsel %vm1050, %v1833, 0
      %v1910 = vsel %vm1050, %v1834, 0
      %v1913 = vsel %vm1050, %v1835, 0
      %v1916 = vsel %vm1050, %v1836, 0
      %v1919 = vsel %vm1050, %v1837, 0
      %v1922 = vsel %vm1050, %v1838, 0
      %v1925 = vsel %vm1050, %v1839, 0
      %v1928 = vsel %vm1050, %v1840, 0
      %v1931 = vsel %vm1050, %v1841, 0
      %v1934 = vsel %vm1050, %v1842, 0
      %v1937 = vsel %vm1050, %v1843, 0
      %v1940 = vsel %vm1050, %v1844, 0
      %v1943 = vsel %vm1050, %v1845, 0
      %v1946 = vsel %vm1050, %v1846, 0
      %v1949 = vsel %vm1050, %v1847, 0
      %v1952 = vsel %vm1050, %v1848, 0
      %1954 = vmatprep.subr.bf16.mxu0 0
      %1955 = vmatpush1.bf16.msra.mxu0 %v1900
      %1956 = vmatprep.subr.bf16.mxu0 0
      %1957 = vmatpush1.bf16.msra.mxu0 %v1901
      %1958 = vmatprep.subr.bf16.mxu0 0
      %1959 = vmatpush1.bf16.msra.mxu0 %v1902
      %1960 = vmatprep.subr.bf16.mxu0 0
      %1961 = vmatpush1.bf16.msra.mxu0 0
      %1962 = vmatprep.subr.bf16.mxu0 0
      %1963 = vmatpush1.bf16.msra.mxu0 0
      %1964 = vmatprep.subr.bf16.mxu0 0
      %1965 = vmatpush1.bf16.msra.mxu0 0
      %1966 = vmatprep.subr.bf16.mxu0 0
      %1967 = vmatpush1.bf16.msra.mxu0 0
      %1968 = vmatprep.subr.bf16.mxu0 0
      %1969 = vmatpush1.bf16.msra.mxu0 0
      %1970 = vmatprep.subr.bf16.mxu0 0
      %1971 = vmatpush1.bf16.msra.mxu0 0
      %1972 = vmatprep.subr.bf16.mxu0 0
      %1973 = vmatpush1.bf16.msra.mxu0 0
      %1974 = vmatprep.subr.bf16.mxu0 0
      %1975 = vmatpush1.bf16.msra.mxu0 0
      %1976 = vmatprep.subr.bf16.mxu0 0
      %1977 = vmatpush1.bf16.msra.mxu0 0
      %1978 = vmatprep.subr.bf16.mxu0 0
      %1979 = vmatpush1.bf16.msra.mxu0 0
      %1980 = vmatprep.subr.bf16.mxu0 0
      %1981 = vmatpush1.bf16.msra.mxu0 0
      %1982 = vmatprep.subr.bf16.mxu0 0
      %1983 = vmatpush1.bf16.msra.mxu0 0
      %1984 = vmatprep.subr.bf16.mxu0 0
      %1985 = vmatpush1.bf16.msra.mxu0 0
      %1986 = vmatprep.mubr.bf16.mxu0 0
      %1987 = vmatmul.mubr.bf16.gmra.mrb[0].mxu0 %v1907
      %v1988 = vpop.f32.mrb[0].mxu0
      %v1989 = vadd.f32 0.0, %v1988
      %v1990 = vpop.f32.mrb[0].mxu0
      %v1991 = vpop.f32.mrb[0].mxu0
      %v1992 = vadd.f32 0.0, %v1991
      %v1993 = vpop.f32.mrb[0].mxu0
      %1994 = vmatprep.mubr.bf16.mxu0 0
      %1995 = vmatmul.mubr.bf16.gmra.mrb[0].mxu0 %v1910
      %v1996 = vpop.f32.mrb[0].mxu0
      %v1997 = vadd.f32 0.0, %v1996
      %v1998 = vpop.f32.mrb[0].mxu0
      %v1999 = vpop.f32.mrb[0].mxu0
      %v2000 = vadd.f32 0.0, %v1999
      %v2001 = vpop.f32.mrb[0].mxu0
      %2002 = vmatprep.mubr.bf16.mxu0 0
      %2003 = vmatmul.mubr.bf16.gmra.mrb[0].mxu0 %v1913
      %v2004 = vpop.f32.mrb[0].mxu0
      %v2005 = vadd.f32 0.0, %v2004
      %v2006 = vpop.f32.mrb[0].mxu0
      %v2007 = vpop.f32.mrb[0].mxu0
      %v2008 = vadd.f32 0.0, %v2007
      %v2009 = vpop.f32.mrb[0].mxu0
      %2010 = vmatprep.mubr.bf16.mxu0 0
      %2011 = vmatmul.mubr.bf16.gmra.mrb[0].mxu0 %v1916
      %v2012 = vpop.f32.mrb[0].mxu0
      %v2013 = vadd.f32 0.0, %v2012
      %v2014 = vpop.f32.mrb[0].mxu0
      %v2015 = vpop.f32.mrb[0].mxu0
      %v2016 = vadd.f32 0.0, %v2015
      %v2017 = vpop.f32.mrb[0].mxu0
      %2018 = vmatprep.mubr.bf16.mxu0 0
      %2019 = vmatmul.mubr.bf16.gmra.mrb[0].mxu0 %v1919
      %v2020 = vpop.f32.mrb[0].mxu0
      %v2021 = vadd.f32 0.0, %v2020
      %v2022 = vpop.f32.mrb[0].mxu0
      %v2023 = vpop.f32.mrb[0].mxu0
      %v2024 = vadd.f32 0.0, %v2023
      %v2025 = vpop.f32.mrb[0].mxu0
      %2026 = vmatprep.mubr.bf16.mxu0 0
      %2027 = vmatmul.mubr.bf16.gmra.mrb[0].mxu0 %v1922
      %v2028 = vpop.f32.mrb[0].mxu0
      %v2029 = vadd.f32 0.0, %v2028
      %v2030 = vpop.f32.mrb[0].mxu0
      %v2031 = vpop.f32.mrb[0].mxu0
      %v2032 = vadd.f32 0.0, %v2031
      %v2033 = vpop.f32.mrb[0].mxu0
      %2034 = vmatprep.mubr.bf16.mxu0 0
      %2035 = vmatmul.mubr.bf16.gmra.mrb[0].mxu0 %v1925
      %v2036 = vpop.f32.mrb[0].mxu0
      %v2037 = vadd.f32 0.0, %v2036
      %v2038 = vpop.f32.mrb[0].mxu0
      %v2039 = vpop.f32.mrb[0].mxu0
      %v2040 = vadd.f32 0.0, %v2039
      %v2041 = vpop.f32.mrb[0].mxu0
      %2042 = vmatprep.mubr.bf16.mxu0 0
      %2043 = vmatmul.mubr.bf16.gmra.mrb[0].mxu0 %v1928
      %v2044 = vpop.f32.mrb[0].mxu0
      %v2045 = vadd.f32 0.0, %v2044
      %v2046 = vpop.f32.mrb[0].mxu0
      %v2047 = vpop.f32.mrb[0].mxu0
      %v2048 = vadd.f32 0.0, %v2047
      %v2049 = vpop.f32.mrb[0].mxu0
      %2050 = vmatprep.mubr.bf16.mxu0 0
      %2051 = vmatmul.mubr.bf16.gmra.mrb[0].mxu0 %v1931
      %v2052 = vpop.f32.mrb[0].mxu0
      %v2053 = vadd.f32 0.0, %v2052
      %v2054 = vpop.f32.mrb[0].mxu0
      %v2055 = vpop.f32.mrb[0].mxu0
      %v2056 = vadd.f32 0.0, %v2055
      %v2057 = vpop.f32.mrb[0].mxu0
      %2058 = vmatprep.mubr.bf16.mxu0 0
      %2059 = vmatmul.mubr.bf16.gmra.mrb[0].mxu0 %v1934
      %v2060 = vpop.f32.mrb[0].mxu0
      %v2061 = vadd.f32 0.0, %v2060
      %v2062 = vpop.f32.mrb[0].mxu0
      %v2063 = vpop.f32.mrb[0].mxu0
      %v2064 = vadd.f32 0.0, %v2063
      %v2065 = vpop.f32.mrb[0].mxu0
      %2066 = vmatprep.mubr.bf16.mxu0 0
      %2067 = vmatmul.mubr.bf16.gmra.mrb[0].mxu0 %v1937
      %v2068 = vpop.f32.mrb[0].mxu0
      %v2069 = vadd.f32 0.0, %v2068
      %v2070 = vpop.f32.mrb[0].mxu0
      %v2071 = vpop.f32.mrb[0].mxu0
      %v2072 = vadd.f32 0.0, %v2071
      %v2073 = vpop.f32.mrb[0].mxu0
      %2074 = vmatprep.mubr.bf16.mxu0 0
      %2075 = vmatmul.mubr.bf16.gmra.mrb[0].mxu0 %v1940
      %v2076 = vpop.f32.mrb[0].mxu0
      %v2077 = vadd.f32 0.0, %v2076
      %v2078 = vpop.f32.mrb[0].mxu0
      %v2079 = vpop.f32.mrb[0].mxu0
      %v2080 = vadd.f32 0.0, %v2079
      %v2081 = vpop.f32.mrb[0].mxu0
      %2082 = vmatprep.mubr.bf16.mxu0 0
      %2083 = vmatmul.mubr.bf16.gmra.mrb[0].mxu0 %v1943
      %v2084 = vpop.f32.mrb[0].mxu0
      %v2085 = vadd.f32 0.0, %v2084
      %v2086 = vpop.f32.mrb[0].mxu0
      %v2087 = vpop.f32.mrb[0].mxu0
      %v2088 = vadd.f32 0.0, %v2087
      %v2089 = vpop.f32.mrb[0].mxu0
      %2090 = vmatprep.mubr.bf16.mxu0 0
      %2091 = vmatmul.mubr.bf16.gmra.mrb[0].mxu0 %v1946
      %v2092 = vpop.f32.mrb[0].mxu0
      %v2093 = vadd.f32 0.0, %v2092
      %v2094 = vpop.f32.mrb[0].mxu0
      %v2095 = vpop.f32.mrb[0].mxu0
      %v2096 = vadd.f32 0.0, %v2095
      %v2097 = vpop.f32.mrb[0].mxu0
      %2098 = vmatprep.mubr.bf16.mxu0 0
      %2099 = vmatmul.mubr.bf16.gmra.mrb[0].mxu0 %v1949
      %v2100 = vpop.f32.mrb[0].mxu0
      %v2101 = vadd.f32 0.0, %v2100
      %v2102 = vpop.f32.mrb[0].mxu0
      %v2103 = vpop.f32.mrb[0].mxu0
      %v2104 = vadd.f32 0.0, %v2103
      %v2105 = vpop.f32.mrb[0].mxu0
      %2106 = vmatprep.mubr.bf16.mxu0 0
      %2107 = vmatmul.mubr.bf16.gmra.mrb[0].mxu0 %v1952
      %v2108 = vpop.f32.mrb[0].mxu0
      %v2109 = vadd.f32 0.0, %v2108
      %v2110 = vpop.f32.mrb[0].mxu0
      %v2111 = vpop.f32.mrb[0].mxu0
      %v2112 = vadd.f32 0.0, %v2111
      %v2113 = vpop.f32.mrb[0].mxu0
      %2114 = vdwg.mxu0
      %v2115 = vadd.f32 %v1849, %v1989
      %v2116 = vadd.f32 %v1850, %v1992
      %v2117 = vadd.f32 %v1851, %v1997
      %v2118 = vadd.f32 %v1852, %v2000
      %v2119 = vadd.f32 %v1853, %v2005
      %v2120 = vadd.f32 %v1854, %v2008
      %v2121 = vadd.f32 %v1855, %v2013
      %v2122 = vadd.f32 %v1856, %v2016
      %v2123 = vadd.f32 %v1857, %v2021
      %v2124 = vadd.f32 %v1858, %v2024
      %v2125 = vadd.f32 %v1859, %v2029
      %v2126 = vadd.f32 %v1860, %v2032
      %v2127 = vadd.f32 %v1861, %v2037
      %v2128 = vadd.f32 %v1862, %v2040
      %v2129 = vadd.f32 %v1863, %v2045
      %v2130 = vadd.f32 %v1864, %v2048
      %v2131 = vadd.f32 %v1865, %v2053
      %v2132 = vadd.f32 %v1866, %v2056
      %v2133 = vadd.f32 %v1867, %v2061
      %v2134 = vadd.f32 %v1868, %v2064
      %v2135 = vadd.f32 %v1869, %v2069
      %v2136 = vadd.f32 %v1870, %v2072
      %v2137 = vadd.f32 %v1871, %v2077
      %v2138 = vadd.f32 %v1872, %v2080
      %v2139 = vadd.f32 %v1873, %v2085
      %v2140 = vadd.f32 %v1874, %v2088
      %v2141 = vadd.f32 %v1875, %v2093
      %v2142 = vadd.f32 %v1876, %v2096
      %v2143 = vadd.f32 %v1877, %v2101
      %v2144 = vadd.f32 %v1878, %v2104
      %v2145 = vadd.f32 %v1879, %v2109
      %v2146 = vadd.f32 %v1880, %v2112
      %2147 = vst.msk [vmem:[#allocation3] sm:$0xff] %vm1001, %v2115
      %2148 = vst.msk [vmem:[#allocation3 + $0x8] sm:$0xff] %vm1001, %v2116
      %2149 = vst.msk [vmem:[#allocation3 + $0x10] sm:$0xff] %vm1001, %v2117
      %2150 = vst.msk [vmem:[#allocation3 + $0x18] sm:$0xff] %vm1001, %v2118
      %2151 = vst.msk [vmem:[#allocation3 + $0x20] sm:$0xff] %vm1001, %v2119
      %2152 = vst.msk [vmem:[#allocation3 + $0x28] sm:$0xff] %vm1001, %v2120
      %2153 = vst.msk [vmem:[#allocation3 + $0x30] sm:$0xff] %vm1001, %v2121
      %2154 = vst.msk [vmem:[#allocation3 + $0x38] sm:$0xff] %vm1001, %v2122
      %2155 = vst.msk [vmem:[#allocation3 + $0x40] sm:$0xff] %vm1001, %v2123
      %2156 = vst.msk [vmem:[#allocation3 + $0x48] sm:$0xff] %vm1001, %v2124
      %2157 = vst.msk [vmem:[#allocation3 + $0x50] sm:$0xff] %vm1001, %v2125
      %2158 = vst.msk [vmem:[#allocation3 + $0x58] sm:$0xff] %vm1001, %v2126
      %2159 = vst.msk [vmem:[#allocation3 + $0x60] sm:$0xff] %vm1001, %v2127
      %2160 = vst.msk [vmem:[#allocation3 + $0x68] sm:$0xff] %vm1001, %v2128
      %2161 = vst.msk [vmem:[#allocation3 + $0x70] sm:$0xff] %vm1001, %v2129
      %2162 = vst.msk [vmem:[#allocation3 + $0x78] sm:$0xff] %vm1001, %v2130
      %2163 = vst.msk [vmem:[#allocation3 + $0x80] sm:$0xff] %vm1001, %v2131
      %2164 = vst.msk [vmem:[#allocation3 + $0x88] sm:$0xff] %vm1001, %v2132
      %2165 = vst.msk [vmem:[#allocation3 + $0x90] sm:$0xff] %vm1001, %v2133
      %2166 = vst.msk [vmem:[#allocation3 + $0x98] sm:$0xff] %vm1001, %v2134
      %2167 = vst.msk [vmem:[#allocation3 + $0xa0] sm:$0xff] %vm1001, %v2135
      %2168 = vst.msk [vmem:[#allocation3 + $0xa8] sm:$0xff] %vm1001, %v2136
      %2169 = vst.msk [vmem:[#allocation3 + $0xb0] sm:$0xff] %vm1001, %v2137
      %2170 = vst.msk [vmem:[#allocation3 + $0xb8] sm:$0xff] %vm1001, %v2138
      %2171 = vst.msk [vmem:[#allocation3 + $0xc0] sm:$0xff] %vm1001, %v2139
      %2172 = vst.msk [vmem:[#allocation3 + $0xc8] sm:$0xff] %vm1001, %v2140
      %2173 = vst.msk [vmem:[#allocation3 + $0xd0] sm:$0xff] %vm1001, %v2141
      %2174 = vst.msk [vmem:[#allocation3 + $0xd8] sm:$0xff] %vm1001, %v2142
      %2175 = vst.msk [vmem:[#allocation3 + $0xe0] sm:$0xff] %vm1001, %v2143
      %2176 = vst.msk [vmem:[#allocation3 + $0xe8] sm:$0xff] %vm1001, %v2144
      %2177 = vst.msk [vmem:[#allocation3 + $0xf0] sm:$0xff] %vm1001, %v2145
      %2178 = vst.msk [vmem:[#allocation3 + $0xf8] sm:$0xff] %vm1001, %v2146
      // Predicated region
      $region53: #{fcn_head_forward.1} parent=47 // pred_check
        %p2179 = pneg %p449
      $region54: #{fcn_head_forward.1} parent=47 // pred_check_branch
        %2181 = sbr.rel (%p2179) target = $region56
      $region55: #{fcn_head_forward.1} parent=47 // pred_region
        %v2182 = vld [vmem:[#allocation3] sm:$0xff]
        %v2183 = vld [vmem:[#allocation3 + $0x8] sm:$0xff]
        %v2184 = vld [vmem:[#allocation3 + $0x10] sm:$0xff]
        %v2185 = vld [vmem:[#allocation3 + $0x18] sm:$0xff]
        %v2186 = vld [vmem:[#allocation3 + $0x20] sm:$0xff]
        %v2187 = vld [vmem:[#allocation3 + $0x28] sm:$0xff]
        %v2188 = vld [vmem:[#allocation3 + $0x30] sm:$0xff]
        %v2189 = vld [vmem:[#allocation3 + $0x38] sm:$0xff]
        %v2190 = vld [vmem:[#allocation3 + $0x40] sm:$0xff]
        %v2191 = vld [vmem:[#allocation3 + $0x48] sm:$0xff]
        %v2192 = vld [vmem:[#allocation3 + $0x50] sm:$0xff]
        %v2193 = vld [vmem:[#allocation3 + $0x58] sm:$0xff]
        %v2194 = vld [vmem:[#allocation3 + $0x60] sm:$0xff]
        %v2195 = vld [vmem:[#allocation3 + $0x68] sm:$0xff]
        %v2196 = vld [vmem:[#allocation3 + $0x70] sm:$0xff]
        %v2197 = vld [vmem:[#allocation3 + $0x78] sm:$0xff]
        %v2198 = vld [vmem:[#allocation3 + $0x80] sm:$0xff]
        %v2199 = vld [vmem:[#allocation3 + $0x88] sm:$0xff]
        %v2200 = vld [vmem:[#allocation3 + $0x90] sm:$0xff]
        %v2201 = vld [vmem:[#allocation3 + $0x98] sm:$0xff]
        %v2202 = vld [vmem:[#allocation3 + $0xa0] sm:$0xff]
        %v2203 = vld [vmem:[#allocation3 + $0xa8] sm:$0xff]
        %v2204 = vld [vmem:[#allocation3 + $0xb0] sm:$0xff]
        %v2205 = vld [vmem:[#allocation3 + $0xb8] sm:$0xff]
        %v2206 = vld [vmem:[#allocation3 + $0xc0] sm:$0xff]
        %v2207 = vld [vmem:[#allocation3 + $0xc8] sm:$0xff]
        %v2208 = vld [vmem:[#allocation3 + $0xd0] sm:$0xff]
        %v2209 = vld [vmem:[#allocation3 + $0xd8] sm:$0xff]
        %v2210 = vld [vmem:[#allocation3 + $0xe0] sm:$0xff]
        %v2211 = vld [vmem:[#allocation3 + $0xe8] sm:$0xff]
        %v2212 = vld [vmem:[#allocation3 + $0xf0] sm:$0xff]
        %v2213 = vld [vmem:[#allocation3 + $0xf8] sm:$0xff]
        %v2214 = vld [vmem:[%s3] sm:$0x1]
        %v2216 = vlaneseq
        %v2217 = vshrl.u32 %v2216, 7
        %v2218 = vsub.s32 0, %v2217
        %v2219 = vrot.slane %v2214, %v2218
        %v2221 = vmul.f32 %v2182, %v2219
        %v2222 = vmul.f32 %v2183, %v2219
        %v2223 = vmul.f32 %v2184, %v2219
        %v2224 = vmul.f32 %v2185, %v2219
        %v2225 = vmul.f32 %v2186, %v2219
        %v2226 = vmul.f32 %v2187, %v2219
        %v2227 = vmul.f32 %v2188, %v2219
        %v2228 = vmul.f32 %v2189, %v2219
        %v2229 = vmul.f32 %v2190, %v2219
        %v2230 = vmul.f32 %v2191, %v2219
        %v2231 = vmul.f32 %v2192, %v2219
        %v2232 = vmul.f32 %v2193, %v2219
        %v2233 = vmul.f32 %v2194, %v2219
        %v2234 = vmul.f32 %v2195, %v2219
        %v2235 = vmul.f32 %v2196, %v2219
        %v2236 = vmul.f32 %v2197, %v2219
        %v2237 = vmul.f32 %v2198, %v2219
        %v2238 = vmul.f32 %v2199, %v2219
        %v2239 = vmul.f32 %v2200, %v2219
        %v2240 = vmul.f32 %v2201, %v2219
        %v2241 = vmul.f32 %v2202, %v2219
        %v2242 = vmul.f32 %v2203, %v2219
        %v2243 = vmul.f32 %v2204, %v2219
        %v2244 = vmul.f32 %v2205, %v2219
        %v2245 = vmul.f32 %v2206, %v2219
        %v2246 = vmul.f32 %v2207, %v2219
        %v2247 = vmul.f32 %v2208, %v2219
        %v2248 = vmul.f32 %v2209, %v2219
        %v2249 = vmul.f32 %v2210, %v2219
        %v2250 = vmul.f32 %v2211, %v2219
        %v2251 = vmul.f32 %v2212, %v2219
        %v2252 = vmul.f32 %v2213, %v2219
        %v2253 = vld [vmem:[%s4] sm:$0x1]
        %v2255 = vlaneseq
        %v2256 = vshrl.u32 %v2255, 7
        %v2257 = vsub.s32 0, %v2256
        %v2258 = vrot.slane %v2253, %v2257
        %v2260 = vadd.f32 %v2221, %v2258
        %v2261 = vadd.f32 %v2222, %v2258
        %v2262 = vadd.f32 %v2223, %v2258
        %v2263 = vadd.f32 %v2224, %v2258
        %v2264 = vadd.f32 %v2225, %v2258
        %v2265 = vadd.f32 %v2226, %v2258
        %v2266 = vadd.f32 %v2227, %v2258
        %v2267 = vadd.f32 %v2228, %v2258
        %v2268 = vadd.f32 %v2229, %v2258
        %v2269 = vadd.f32 %v2230, %v2258
        %v2270 = vadd.f32 %v2231, %v2258
        %v2271 = vadd.f32 %v2232, %v2258
        %v2272 = vadd.f32 %v2233, %v2258
        %v2273 = vadd.f32 %v2234, %v2258
        %v2274 = vadd.f32 %v2235, %v2258
        %v2275 = vadd.f32 %v2236, %v2258
        %v2276 = vadd.f32 %v2237, %v2258
        %v2277 = vadd.f32 %v2238, %v2258
        %v2278 = vadd.f32 %v2239, %v2258
        %v2279 = vadd.f32 %v2240, %v2258
        %v2280 = vadd.f32 %v2241, %v2258
        %v2281 = vadd.f32 %v2242, %v2258
        %v2282 = vadd.f32 %v2243, %v2258
        %v2283 = vadd.f32 %v2244, %v2258
        %v2284 = vadd.f32 %v2245, %v2258
        %v2285 = vadd.f32 %v2246, %v2258
        %v2286 = vadd.f32 %v2247, %v2258
        %v2287 = vadd.f32 %v2248, %v2258
        %v2288 = vadd.f32 %v2249, %v2258
        %v2289 = vadd.f32 %v2250, %v2258
        %v2290 = vadd.f32 %v2251, %v2258
        %v2291 = vadd.f32 %v2252, %v2258
        %v2292 = vmax.f32 %v2260, 0.0
        %v2293 = vmax.f32 %v2261, 0.0
        %v2294 = vmax.f32 %v2262, 0.0
        %v2295 = vmax.f32 %v2263, 0.0
        %v2296 = vmax.f32 %v2264, 0.0
        %v2297 = vmax.f32 %v2265, 0.0
        %v2298 = vmax.f32 %v2266, 0.0
        %v2299 = vmax.f32 %v2267, 0.0
        %v2300 = vmax.f32 %v2268, 0.0
        %v2301 = vmax.f32 %v2269, 0.0
        %v2302 = vmax.f32 %v2270, 0.0
        %v2303 = vmax.f32 %v2271, 0.0
        %v2304 = vmax.f32 %v2272, 0.0
        %v2305 = vmax.f32 %v2273, 0.0
        %v2306 = vmax.f32 %v2274, 0.0
        %v2307 = vmax.f32 %v2275, 0.0
        %v2308 = vmax.f32 %v2276, 0.0
        %v2309 = vmax.f32 %v2277, 0.0
        %v2310 = vmax.f32 %v2278, 0.0
        %v2311 = vmax.f32 %v2279, 0.0
        %v2312 = vmax.f32 %v2280, 0.0
        %v2313 = vmax.f32 %v2281, 0.0
        %v2314 = vmax.f32 %v2282, 0.0
        %v2315 = vmax.f32 %v2283, 0.0
        %v2316 = vmax.f32 %v2284, 0.0
        %v2317 = vmax.f32 %v2285, 0.0
        %v2318 = vmax.f32 %v2286, 0.0
        %v2319 = vmax.f32 %v2287, 0.0
        %v2320 = vmax.f32 %v2288, 0.0
        %v2321 = vmax.f32 %v2289, 0.0
        %v2322 = vmax.f32 %v2290, 0.0
        %v2323 = vmax.f32 %v2291, 0.0
        %v2324 = vpack.c.bf16 %v2293, %v2292
        %v2325 = vpack.c.bf16 %v2295, %v2294
        %v2326 = vpack.c.bf16 %v2297, %v2296
        %v2327 = vpack.c.bf16 %v2299, %v2298
        %v2328 = vpack.c.bf16 %v2301, %v2300
        %v2329 = vpack.c.bf16 %v2303, %v2302
        %v2330 = vpack.c.bf16 %v2305, %v2304
        %v2331 = vpack.c.bf16 %v2307, %v2306
        %v2332 = vpack.c.bf16 %v2309, %v2308
        %v2333 = vpack.c.bf16 %v2311, %v2310
        %v2334 = vpack.c.bf16 %v2313, %v2312
        %v2335 = vpack.c.bf16 %v2315, %v2314
        %v2336 = vpack.c.bf16 %v2317, %v2316
        %v2337 = vpack.c.bf16 %v2319, %v2318
        %v2338 = vpack.c.bf16 %v2321, %v2320
        %v2339 = vpack.c.bf16 %v2323, %v2322
        %v2340 = vld [vmem:[%s5] sm:$0xf]
        %v2341 = vld [vmem:[%s5 + $0x4] sm:$0xf]
        %v2342 = vld [vmem:[%s5 + $0x8] sm:$0xf]
        %v2343 = vld [vmem:[%s5 + $0xc] sm:$0xf]
        %v2344 = vld [vmem:[%s6] sm:$0x1]
        %v2346 = vlaneseq
        %v2347 = vshrl.u32 %v2346, 7
        %v2348 = vsub.s32 0, %v2347
        %v2349 = vrot.slane %v2344, %v2348
        %v2355 = vunpack.c.l.b16 %v2340
        %v2356 = vunpack.c.l.b16 %v2341
        %v2357 = vunpack.c.l.b16 %v2342
        %v2358 = vunpack.c.l.b16 %v2343
        %v2359 = vpack.c.b16 %v2356, %v2355
        %v2360 = vpack.c.b16 %v2358, %v2357
        %v2364 = vsel %vm1001, %v2324, 0
        %v2367 = vsel %vm1001, %v2325, 0
        %v2370 = vsel %vm1001, %v2326, 0
        %v2373 = vsel %vm1001, %v2327, 0
        %v2376 = vsel %vm1001, %v2328, 0
        %v2379 = vsel %vm1001, %v2329, 0
        %v2382 = vsel %vm1001, %v2330, 0
        %v2385 = vsel %vm1001, %v2331, 0
        %v2388 = vsel %vm1001, %v2332, 0
        %v2391 = vsel %vm1001, %v2333, 0
        %v2394 = vsel %vm1001, %v2334, 0
        %v2397 = vsel %vm1001, %v2335, 0
        %v2400 = vsel %vm1001, %v2336, 0
        %v2403 = vsel %vm1001, %v2337, 0
        %v2406 = vsel %vm1001, %v2338, 0
        %v2409 = vsel %vm1001, %v2339, 0
        %2411 = vmatprep.subr.bf16.mxu0 0
        %2412 = vmatpush1.bf16.msra.mxu0 %v2359
        %2413 = vmatprep.subr.bf16.mxu0 0
        %2414 = vmatpush1.bf16.msra.mxu0 %v2360
        %2415 = vmatprep.subr.bf16.mxu0 0
        %2416 = vmatpush1.bf16.msra.mxu0 0
        %2417 = vmatprep.subr.bf16.mxu0 0
        %2418 = vmatpush1.bf16.msra.mxu0 0
        %2419 = vmatprep.subr.bf16.mxu0 0
        %2420 = vmatpush1.bf16.msra.mxu0 0
        %2421 = vmatprep.subr.bf16.mxu0 0
        %2422 = vmatpush1.bf16.msra.mxu0 0
        %2423 = vmatprep.subr.bf16.mxu0 0
        %2424 = vmatpush1.bf16.msra.mxu0 0
        %2425 = vmatprep.subr.bf16.mxu0 0
        %2426 = vmatpush1.bf16.msra.mxu0 0
        %2427 = vmatprep.subr.bf16.mxu0 0
        %2428 = vmatpush1.bf16.msra.mxu0 0
        %2429 = vmatprep.subr.bf16.mxu0 0
        %2430 = vmatpush1.bf16.msra.mxu0 0
        %2431 = vmatprep.subr.bf16.mxu0 0
        %2432 = vmatpush1.bf16.msra.mxu0 0
        %2433 = vmatprep.subr.bf16.mxu0 0
        %2434 = vmatpush1.bf16.msra.mxu0 0
        %2435 = vmatprep.subr.bf16.mxu0 0
        %2436 = vmatpush1.bf16.msra.mxu0 0
        %2437 = vmatprep.subr.bf16.mxu0 0
        %2438 = vmatpush1.bf16.msra.mxu0 0
        %2439 = vmatprep.subr.bf16.mxu0 0
        %2440 = vmatpush1.bf16.msra.mxu0 0
        %2441 = vmatprep.subr.bf16.mxu0 0
        %2442 = vmatpush1.bf16.msra.mxu0 0
        %2443 = vmatprep.mubr.bf16.mxu0 0
        %2444 = vmatmul.mubr.bf16.gmra.mrb[0].mxu0 %v2364
        %v2445 = vpop.f32.mrb[0].mxu0
        %v2446 = vadd.f32 %v2349, %v2445
        %v2447 = vpop.f32.mrb[0].mxu0
        %v2448 = vpop.f32.mrb[0].mxu0
        %v2449 = vadd.f32 %v2349, %v2448
        %v2450 = vpop.f32.mrb[0].mxu0
        %2451 = vmatprep.mubr.bf16.mxu0 0
        %2452 = vmatmul.mubr.bf16.gmra.mrb[0].mxu0 %v2367
        %v2453 = vpop.f32.mrb[0].mxu0
        %v2454 = vadd.f32 %v2349, %v2453
        %v2455 = vpop.f32.mrb[0].mxu0
        %v2456 = vpop.f32.mrb[0].mxu0
        %v2457 = vadd.f32 %v2349, %v2456
        %v2458 = vpop.f32.mrb[0].mxu0
        %2459 = vmatprep.mubr.bf16.mxu0 0
        %2460 = vmatmul.mubr.bf16.gmra.mrb[0].mxu0 %v2370
        %v2461 = vpop.f32.mrb[0].mxu0
        %v2462 = vadd.f32 %v2349, %v2461
        %v2463 = vpop.f32.mrb[0].mxu0
        %v2464 = vpop.f32.mrb[0].mxu0
        %v2465 = vadd.f32 %v2349, %v2464
        %v2466 = vpop.f32.mrb[0].mxu0
        %2467 = vmatprep.mubr.bf16.mxu0 0
        %2468 = vmatmul.mubr.bf16.gmra.mrb[0].mxu0 %v2373
        %v2469 = vpop.f32.mrb[0].mxu0
        %v2470 = vadd.f32 %v2349, %v2469
        %v2471 = vpop.f32.mrb[0].mxu0
        %v2472 = vpop.f32.mrb[0].mxu0
        %v2473 = vadd.f32 %v2349, %v2472
        %v2474 = vpop.f32.mrb[0].mxu0
        %2475 = vmatprep.mubr.bf16.mxu0 0
        %2476 = vmatmul.mubr.bf16.gmra.mrb[0].mxu0 %v2376
        %v2477 = vpop.f32.mrb[0].mxu0
        %v2478 = vadd.f32 %v2349, %v2477
        %v2479 = vpop.f32.mrb[0].mxu0
        %v2480 = vpop.f32.mrb[0].mxu0
        %v2481 = vadd.f32 %v2349, %v2480
        %v2482 = vpop.f32.mrb[0].mxu0
        %2483 = vmatprep.mubr.bf16.mxu0 0
        %2484 = vmatmul.mubr.bf16.gmra.mrb[0].mxu0 %v2379
        %v2485 = vpop.f32.mrb[0].mxu0
        %v2486 = vadd.f32 %v2349, %v2485
        %v2487 = vpop.f32.mrb[0].mxu0
        %v2488 = vpop.f32.mrb[0].mxu0
        %v2489 = vadd.f32 %v2349, %v2488
        %v2490 = vpop.f32.mrb[0].mxu0
        %2491 = vmatprep.mubr.bf16.mxu0 0
        %2492 = vmatmul.mubr.bf16.gmra.mrb[0].mxu0 %v2382
        %v2493 = vpop.f32.mrb[0].mxu0
        %v2494 = vadd.f32 %v2349, %v2493
        %v2495 = vpop.f32.mrb[0].mxu0
        %v2496 = vpop.f32.mrb[0].mxu0
        %v2497 = vadd.f32 %v2349, %v2496
        %v2498 = vpop.f32.mrb[0].mxu0
        %2499 = vmatprep.mubr.bf16.mxu0 0
        %2500 = vmatmul.mubr.bf16.gmra.mrb[0].mxu0 %v2385
        %v2501 = vpop.f32.mrb[0].mxu0
        %v2502 = vadd.f32 %v2349, %v2501
        %v2503 = vpop.f32.mrb[0].mxu0
        %v2504 = vpop.f32.mrb[0].mxu0
        %v2505 = vadd.f32 %v2349, %v2504
        %v2506 = vpop.f32.mrb[0].mxu0
        %2507 = vmatprep.mubr.bf16.mxu0 0
        %2508 = vmatmul.mubr.bf16.gmra.mrb[0].mxu0 %v2388
        %v2509 = vpop.f32.mrb[0].mxu0
        %v2510 = vadd.f32 %v2349, %v2509
        %v2511 = vpop.f32.mrb[0].mxu0
        %v2512 = vpop.f32.mrb[0].mxu0
        %v2513 = vadd.f32 %v2349, %v2512
        %v2514 = vpop.f32.mrb[0].mxu0
        %2515 = vmatprep.mubr.bf16.mxu0 0
        %2516 = vmatmul.mubr.bf16.gmra.mrb[0].mxu0 %v2391
        %v2517 = vpop.f32.mrb[0].mxu0
        %v2518 = vadd.f32 %v2349, %v2517
        %v2519 = vpop.f32.mrb[0].mxu0
        %v2520 = vpop.f32.mrb[0].mxu0
        %v2521 = vadd.f32 %v2349, %v2520
        %v2522 = vpop.f32.mrb[0].mxu0
        %2523 = vmatprep.mubr.bf16.mxu0 0
        %2524 = vmatmul.mubr.bf16.gmra.mrb[0].mxu0 %v2394
        %v2525 = vpop.f32.mrb[0].mxu0
        %v2526 = vadd.f32 %v2349, %v2525
        %v2527 = vpop.f32.mrb[0].mxu0
        %v2528 = vpop.f32.mrb[0].mxu0
        %v2529 = vadd.f32 %v2349, %v2528
        %v2530 = vpop.f32.mrb[0].mxu0
        %2531 = vmatprep.mubr.bf16.mxu0 0
        %2532 = vmatmul.mubr.bf16.gmra.mrb[0].mxu0 %v2397
        %v2533 = vpop.f32.mrb[0].mxu0
        %v2534 = vadd.f32 %v2349, %v2533
        %v2535 = vpop.f32.mrb[0].mxu0
        %v2536 = vpop.f32.mrb[0].mxu0
        %v2537 = vadd.f32 %v2349, %v2536
        %v2538 = vpop.f32.mrb[0].mxu0
        %2539 = vmatprep.mubr.bf16.mxu0 0
        %2540 = vmatmul.mubr.bf16.gmra.mrb[0].mxu0 %v2400
        %v2541 = vpop.f32.mrb[0].mxu0
        %v2542 = vadd.f32 %v2349, %v2541
        %v2543 = vpop.f32.mrb[0].mxu0
        %v2544 = vpop.f32.mrb[0].mxu0
        %v2545 = vadd.f32 %v2349, %v2544
        %v2546 = vpop.f32.mrb[0].mxu0
        %2547 = vmatprep.mubr.bf16.mxu0 0
        %2548 = vmatmul.mubr.bf16.gmra.mrb[0].mxu0 %v2403
        %v2549 = vpop.f32.mrb[0].mxu0
        %v2550 = vadd.f32 %v2349, %v2549
        %v2551 = vpop.f32.mrb[0].mxu0
        %v2552 = vpop.f32.mrb[0].mxu0
        %v2553 = vadd.f32 %v2349, %v2552
        %v2554 = vpop.f32.mrb[0].mxu0
        %2555 = vmatprep.mubr.bf16.mxu0 0
        %2556 = vmatmul.mubr.bf16.gmra.mrb[0].mxu0 %v2406
        %v2557 = vpop.f32.mrb[0].mxu0
        %v2558 = vadd.f32 %v2349, %v2557
        %v2559 = vpop.f32.mrb[0].mxu0
        %v2560 = vpop.f32.mrb[0].mxu0
        %v2561 = vadd.f32 %v2349, %v2560
        %v2562 = vpop.f32.mrb[0].mxu0
        %2563 = vmatprep.mubr.bf16.mxu0 0
        %2564 = vmatmul.mubr.bf16.gmra.mrb[0].mxu0 %v2409
        %v2565 = vpop.f32.mrb[0].mxu0
        %v2566 = vadd.f32 %v2349, %v2565
        %v2567 = vpop.f32.mrb[0].mxu0
        %v2568 = vpop.f32.mrb[0].mxu0
        %v2569 = vadd.f32 %v2349, %v2568
        %v2570 = vpop.f32.mrb[0].mxu0
        %2571 = vdwg.mxu0
        %2572 = vst [vmem:[%s446] sm:$0xff] %v2446
        %2573 = vst [vmem:[%s446 + $0x8] sm:$0xff] %v2449
        %2574 = vst [vmem:[%s446 + $0x10] sm:$0xff] %v2454
        %2575 = vst [vmem:[%s446 + $0x18] sm:$0xff] %v2457
        %2576 = vst [vmem:[%s446 + $0x20] sm:$0xff] %v2462
        %2577 = vst [vmem:[%s446 + $0x28] sm:$0xff] %v2465
        %2578 = vst [vmem:[%s446 + $0x30] sm:$0xff] %v2470
        %2579 = vst [vmem:[%s446 + $0x38] sm:$0xff] %v2473
        %2580 = vst [vmem:[%s446 + $0x40] sm:$0xff] %v2478
        %2581 = vst [vmem:[%s446 + $0x48] sm:$0xff] %v2481
        %2582 = vst [vmem:[%s446 + $0x50] sm:$0xff] %v2486
        %2583 = vst [vmem:[%s446 + $0x58] sm:$0xff] %v2489
        %2584 = vst [vmem:[%s446 + $0x60] sm:$0xff] %v2494
        %2585 = vst [vmem:[%s446 + $0x68] sm:$0xff] %v2497
        %2586 = vst [vmem:[%s446 + $0x70] sm:$0xff] %v2502
        %2587 = vst [vmem:[%s446 + $0x78] sm:$0xff] %v2505
        %2588 = vst [vmem:[%s446 + $0x80] sm:$0xff] %v2510
        %2589 = vst [vmem:[%s446 + $0x88] sm:$0xff] %v2513
        %2590 = vst [vmem:[%s446 + $0x90] sm:$0xff] %v2518
        %2591 = vst [vmem:[%s446 + $0x98] sm:$0xff] %v2521
        %2592 = vst [vmem:[%s446 + $0xa0] sm:$0xff] %v2526
        %2593 = vst [vmem:[%s446 + $0xa8] sm:$0xff] %v2529
        %2594 = vst [vmem:[%s446 + $0xb0] sm:$0xff] %v2534
        %2595 = vst [vmem:[%s446 + $0xb8] sm:$0xff] %v2537
        %2596 = vst [vmem:[%s446 + $0xc0] sm:$0xff] %v2542
        %2597 = vst [vmem:[%s446 + $0xc8] sm:$0xff] %v2545
        %2598 = vst [vmem:[%s446 + $0xd0] sm:$0xff] %v2550
        %2599 = vst [vmem:[%s446 + $0xd8] sm:$0xff] %v2553
        %2600 = vst [vmem:[%s446 + $0xe0] sm:$0xff] %v2558
        %2601 = vst [vmem:[%s446 + $0xe8] sm:$0xff] %v2561
        %2602 = vst [vmem:[%s446 + $0xf0] sm:$0xff] %v2566
        %2603 = vst [vmem:[%s446 + $0xf8] sm:$0xff] %v2569
      $region56: #{fcn_head_forward.1} parent=47 // pred_fallthru
        _
      %s2604 = smul.u32 32, %s24
      %p2605 = scmp.lt.s32.totalorder %s23, 1
      %s2606 = scalar_select %p2605, %s23, 1
      %p2607 = scmp.lt.s32.totalorder %s2604, 31
      %s2608 = scalar_select %p2607, %s2604, 31
      %s2609 = smul.addr %s2606, 32
      %s2610 = sadd.s32 %s2608, %s2609
      %s2611 = smul.addr %s2610, 8
      %s2612 = scalar_lea.vmem %s7, %s2611
      // Predicated region
      $region57: #{fcn_head_forward.1} parent=47 // pred_check
        %p2613 = pneg %p231
      $region58: #{fcn_head_forward.1} parent=47 // pred_check_branch
        %2615 = sbr.rel (%p2613) target = $region60
      $region59: #{fcn_head_forward.1} parent=47 // pred_region
        %s2616 = smul.u32 32, %s24
      $region60: #{fcn_head_forward.1} parent=47 // pred_fallthru
        _
    $region48: #{fcn_head_forward.1} parent=5 // pred_fallthru
      _
    %p2617 = scmp.le.s32.totalorder 2, %s13
    // Predicated region
    $region61: #{fcn_head_forward.1} parent=5 // pred_check
      %p2618 = pneg %p2617
    $region62: #{fcn_head_forward.1} parent=5 // pred_check_branch
      %2620 = sbr.rel (%p2618) target = $region64
    $region63: #{fcn_head_forward.1} parent=5 // pred_region
      %s2621 = ssub.s32 %s13, 2
      // Predicated region
      $region65: #{fcn_head_forward.1} parent=63 // pred_check
        %p2622 = pneg %p237
      $region66: #{fcn_head_forward.1} parent=63 // pred_check_branch
        %2624 = sbr.rel (%p2622) target = $region68
      $region67: #{fcn_head_forward.1} parent=63 // pred_region
        %s2625 = smul.u32 32, %s27
        %p2626 = scmp.lt.s32.totalorder %s26, 1
        %s2627 = scalar_select %p2626, %s26, 1
        %p2628 = scmp.lt.s32.totalorder %s2625, 31
        %s2629 = scalar_select %p2628, %s2625, 31
        %s2630 = smul.addr %s2627, 32
        %s2631 = sadd.s32 %s2629, %s2630
        %s2632 = smul.addr %s2631, 8
        %s2633 = scalar_lea.vmem %s7, %s2632
      $region68: #{fcn_head_forward.1} parent=63 // pred_fallthru
        _
    $region64: #{fcn_head_forward.1} parent=5 // pred_fallthru
      _
  $region6: #{fcn_head_forward.1} parent=0 // loop_footer
    %s17 = sadd.s32 1, %s13
  $region7: #{fcn_head_forward.1} parent=0 // loop_footer_branch
    %12 = sbr.rel target = $region3
  $region8: #{fcn_head_forward.1} parent=0 // loop_exit
    _

</llo_original>
